<compile_context>
chip_gen: v6e
topology: v6e:2x2x1
jax: 0.10.0
libtpu: 0.0.40
codegen_flags: <defaults>
</compile_context>

<pallas_src>
import jax
import jax.numpy as jnp
import numpy as np
from jax import lax
from jax.experimental import pallas as pl
from jax.experimental.pallas import tpu as pltpu  # noqa: F401  (TPU-specific tuning hooks)

# ---- config (small shapes consistent with the module) ----
B = 2            # batch
P = 8            # num planets (nodes per graph)
DIN = 4          # input_dim (feature 0 = longitude in degrees)
H = 32           # hidden_dim
H2 = H // 2      # hidden_dim // 2 in output projection
DOUT = 3         # output_dim
L = 3            # num_layers
N = B * P        # flattened node count
THRESHOLD = 10.0
NEG_SLOPE = 0.2
NEG_INF = -1e30
OUT_PAD = 128    # lane-dense padded output width

# ---- densified packed-parameter slab layout (f32 [N_ROWS, OUT_PAD] = 32 KiB) ----
LANE_STRIDE = 40                    # per-layer lane offset inside the shared GAT rows
R_WCAT = 0                          # rows 0..H-1   : [W_l | W_l@a_dst_l] at lanes 40*l..40*l+H
R_ASRC = H                          # row H         : a_src_l at lanes 40*l..40*l+H-1
R_BGAT = H + 1                      # row H+1       : b_gat_l at lanes 40*l..40*l+H-1
R_MISC = H + 2                      # row H+2       : b_in(0:H), b_out1(C_B1:+H2), e0 one-hot(C_E0:+DIN)
R_WIN = H + 3                       # rows ..+DIN-1 : w_in at lanes 0:H
R_SEL = R_WIN                       # rows ..+B-1   : mean-pool selector at lanes C_SEL:+N
R_OUT = (R_WIN + max(DIN, B) + 7) // 8 * 8   # rows R_OUT..R_OUT+H2-1 ("out block", full 128 lanes):
C_W1T = 8                           #   lanes 0:DOUT   = w_out2 ; lanes C_W1T:+H = w_out1^T
C_MASK = 40                         #   lanes C_MASK:+N = block-diagonal batch mask (1/0)
R_B2 = R_OUT + H2                   # row R_B2      : b_out2 at lanes 0:DOUT, rest zero
N_ROWS = (R_B2 + 1 + 7) // 8 * 8
C_B1 = 40
C_SEL = 40
C_E0 = 64


def gnn_kernel(x_ref, prm_ref, o_ref):
    x = x_ref[...]                                          # [N, DIN]

    # ---- graph construction: circular distance + precomputed block-diagonal batch mask ----
    # longitude as a lane-major [1, N] row: one-hot row (from the slab) contracted against x;
    # avoids a separate lon DMA and any in-kernel transpose.
    e0 = prm_ref[R_MISC:R_MISC + 1, C_E0:C_E0 + DIN]        # [1, DIN] = [1, 0, 0, ...]
    lon_row = lax.dot_general(e0, x, (((1,), (1,)), ((), ())),
                              preferred_element_type=jnp.float32)     # [1, N]
    lon_col = x[:, 0:1]                                     # [N, 1]
    diff = jnp.abs(lon_col - lon_row)                       # [N, N]
    dm = diff - 360.0 * jnp.floor(diff * (1.0 / 360.0))     # |.| mod 360 (diff >= 0)
    dist = jnp.minimum(dm, 360.0 - dm)
    blk = prm_ref[R_OUT:R_OUT + N, C_MASK:C_MASK + N]       # [N, N] precomputed 1/0 block mask
    adj = jnp.logical_and(dist < THRESHOLD, blk > 0.5)      # includes self loops

    # ---- input projection ----
    w_in = prm_ref[R_WIN:R_WIN + DIN, 0:H]                  # [DIN, H]
    b_in = prm_ref[R_MISC:R_MISC + 1, 0:H]                  # [1, H]
    h = jnp.dot(x, w_in, preferred_element_type=jnp.float32) + b_in   # [N, H]

    # ---- GAT layers (masked dense attention; statically unrolled) ----
    for l in range(L):
        c0 = l * LANE_STRIDE
        w_cat = prm_ref[R_WCAT:R_WCAT + H, c0:c0 + H + 1]   # [H, H+1] = [W | W@a_dst]
        a_src = prm_ref[R_ASRC:R_ASRC + 1, c0:c0 + H]       # [1, H]
        b_g = prm_ref[R_BGAT:R_BGAT + 1, c0:c0 + H]         # [1, H]

        z = jnp.dot(h, w_cat, preferred_element_type=jnp.float32)     # [N, H+1]
        wh = z[:, 0:H]                                      # [N, H]  W h
        s_dst = z[:, H:H + 1]                               # [N, 1]  a_dst . Wh_i
        s_src = lax.dot_general(a_src, wh, (((1,), (1,)), ((), ())),
                                preferred_element_type=jnp.float32)   # [1, N] a_src . Wh_j

        e = s_dst + s_src                                   # [N, N]
        e = jnp.where(e > 0, e, NEG_SLOPE * e)              # LeakyReLU(0.2)
        e = jnp.where(adj, e, NEG_INF)
        p = jnp.exp(e - jnp.max(e, axis=1, keepdims=True))  # masked entries underflow to 0
        alpha = p * pl.reciprocal(jnp.sum(p, axis=1, keepdims=True), approx=True)
        h = jnp.dot(alpha, wh, preferred_element_type=jnp.float32) + b_g
        h = jnp.maximum(h, 0.0)                             # ReLU (dropout = identity)

    # ---- per-batch mean pooling via precomputed selector matmul ----
    sel = prm_ref[R_SEL:R_SEL + B, C_SEL:C_SEL + N]         # [B, N], 1/P inside own graph
    pooled = jnp.dot(sel, h, preferred_element_type=jnp.float32)      # [B, H]

    # ---- output MLP ----
    w1t = prm_ref[R_OUT:R_OUT + H2, C_W1T:C_W1T + H]        # [H2, H] = w_out1^T
    b1 = prm_ref[R_MISC:R_MISC + 1, C_B1:C_B1 + H2]         # [1, H2]
    z1 = lax.dot_general(pooled, w1t, (((1,), (1,)), ((), ())),
                         preferred_element_type=jnp.float32) + b1     # [B, H2]
    z1 = jnp.maximum(z1, 0.0)

    # full-width out block: lanes 0:DOUT are the real w_out2 columns, lanes >= 8 hold the
    # co-located w_out1^T / mask data -> those output lanes are garbage-but-finite and are
    # sliced away in the wrapper; the [B, 128] store stays lane-dense / unmasked.
    w2blk = prm_ref[R_OUT:R_OUT + H2, :]                    # [H2, OUT_PAD]
    b2row = prm_ref[R_B2:R_B2 + 1, :]                       # [1, OUT_PAD]
    o_ref[...] = jnp.dot(z1, w2blk, preferred_element_type=jnp.float32) + b2row


def pack_params(params):
    """Pack all parameters + constant tensors into one f32 [N_ROWS, OUT_PAD] slab.

    Pure numpy (zero device work). Call ONCE and reuse the result across forward calls:
    this hoists the former per-call XLA packing prologue completely off the hot path.
    """
    # layout sanity (per review: assert instead of silently corrupting on shape changes)
    assert DIN <= 8 and DOUT <= 8 and B <= DIN
    assert H + 1 <= LANE_STRIDE and LANE_STRIDE * (L - 1) + H + 1 <= OUT_PAD
    assert R_WIN + DIN <= R_OUT and R_SEL + B <= R_OUT
    assert C_W1T >= 8 >= DOUT and C_W1T + H <= C_MASK and C_MASK + N <= OUT_PAD
    assert C_B1 + H2 <= C_E0 and C_E0 + DIN <= OUT_PAD
    assert N == H2, "block mask is co-located in the [H2, 128] out-block rows"
    assert R_B2 < N_ROWS

    p = {k: np.asarray(v, np.float32) for k, v in params.items()}
    slab = np.zeros((N_ROWS, OUT_PAD), np.float32)

    # GAT layers: [W | W@a_dst] side-by-side in lanes, a_src / b_gat share single rows
    for l in range(L):
        c0 = l * LANE_STRIDE
        w = p["w_gat"][l]                                   # [H, H]
        slab[R_WCAT:R_WCAT + H, c0:c0 + H] = w
        slab[R_WCAT:R_WCAT + H, c0 + H] = w @ p["a_dst"][l].reshape(H)   # fused a_dst column
        slab[R_ASRC, c0:c0 + H] = p["a_src"][l].reshape(H)
        slab[R_BGAT, c0:c0 + H] = p["b_gat"][l].reshape(H)

    # input projection + small vectors
    slab[R_WIN:R_WIN + DIN, 0:H] = p["w_in"]
    slab[R_MISC, 0:H] = p["b_in"].reshape(H)
    slab[R_MISC, C_B1:C_B1 + H2] = p["b_out1"].reshape(H2)
    slab[R_MISC, C_E0] = 1.0                                # one-hot longitude selector row

    # output MLP: w_out2 in lanes 0:DOUT, w_out1^T co-located in the zero lanes
    slab[R_OUT:R_OUT + H2, 0:DOUT] = p["w_out2"]
    slab[R_OUT:R_OUT + H2, C_W1T:C_W1T + H] = p["w_out1"].T
    slab[R_B2, 0:DOUT] = p["b_out2"].reshape(DOUT)

    # constant tensors: block-diagonal batch mask and mean-pool selector
    bid = np.arange(N) // P
    slab[R_OUT:R_OUT + N, C_MASK:C_MASK + N] = (bid[:, None] == bid[None, :]).astype(np.float32)
    slab[R_SEL:R_SEL + B, C_SEL:C_SEL + N] = (np.arange(B)[:, None] == bid[None, :]) / float(P)

    return jnp.asarray(slab)


def gnn_forward(x, slab):
    """x: [B, P, DIN] float32, slab: pre-packed params -> [B, DOUT] float32."""
    x_nodes = x.reshape(N, DIN)                             # flatten batch into sublanes
    out = pl.pallas_call(                                   # no grid: one program, 2 input DMAs
        gnn_kernel,
        out_shape=jax.ShapeDtypeStruct((B, OUT_PAD), jnp.float32),
    )(x_nodes, slab)
    return out[:, :DOUT]                                    # lane-dense store, slice outside


def init_params(key):
    ks = jax.random.split(key, 10)
    s = 0.1
    return {
        "w_in":   s * jax.random.normal(ks[0], (DIN, H), jnp.float32),
        "b_in":   s * jax.random.normal(ks[1], (1, H), jnp.float32),
        "w_gat":  s * jax.random.normal(ks[2], (L, H, H), jnp.float32),
        "a_src":  s * jax.random.normal(ks[3], (L, 1, H), jnp.float32),
        "a_dst":  s * jax.random.normal(ks[4], (L, 1, H), jnp.float32),
        "b_gat":  s * jax.random.normal(ks[5], (L, 1, H), jnp.float32),
        "w_out1": s * jax.random.normal(ks[6], (H, H2), jnp.float32),
        "b_out1": s * jax.random.normal(ks[7], (1, H2), jnp.float32),
        "w_out2": s * jax.random.normal(ks[8], (H2, DOUT), jnp.float32),
        "b_out2": s * jax.random.normal(ks[9], (1, DOUT), jnp.float32),
    }


def reference_forward(x, params):
    """Pure-JAX mirror of GNNModel.forward (eval mode) used to validate the kernel/slab layout."""
    h = x.reshape(N, DIN) @ params["w_in"] + params["b_in"]
    lon = x[:, :, 0].reshape(N)
    diff = jnp.abs(lon[:, None] - lon[None, :]) % 360.0
    dist = jnp.minimum(diff, 360.0 - diff)
    bid = jnp.arange(N) // P
    adj = (dist < THRESHOLD) & (bid[:, None] == bid[None, :])
    for l in range(L):
        wh = h @ params["w_gat"][l]
        s_dst = wh @ params["a_dst"][l].reshape(H, 1)
        s_src = wh @ params["a_src"][l].reshape(H, 1)
        e = s_dst + s_src.T
        e = jnp.where(e > 0, e, NEG_SLOPE * e)
        e = jnp.where(adj, e, -jnp.inf)
        alpha = jax.nn.softmax(e, axis=1)
        h = jnp.maximum(alpha @ wh + params["b_gat"][l].reshape(1, H), 0.0)
    pooled = h.reshape(B, P, H).mean(axis=1)
    z1 = jnp.maximum(pooled @ params["w_out1"] + params["b_out1"], 0.0)
    return z1 @ params["w_out2"] + params["b_out2"]


if __name__ == "__main__":
    key = jax.random.PRNGKey(0)
    k_x, k_p = jax.random.split(key)
    # feature 0 = longitude in [0, 360); remaining features arbitrary
    x = jax.random.uniform(k_x, (B, P, DIN), jnp.float32)
    x = x.at[:, :, 0].set(x[:, :, 0] * 360.0)
    params = init_params(k_p)

    slab = pack_params(params)          # hoisted: packed ONCE, off the per-call jitted path
    fwd = jax.jit(gnn_forward)
    out = jax.block_until_ready(fwd(x, slab))

    assert out.shape == (B, DOUT) and out.dtype == jnp.float32
    assert bool(jnp.all(jnp.isfinite(out)))
    # loose tolerance: guards against slab-layout/indexing bugs while absorbing
    # approx-reciprocal and MXU-precision differences vs the plain-XLA reference.
    ref = reference_forward(x, params)
    assert bool(jnp.allclose(out, ref, rtol=5e-2, atol=5e-2))
    print("KERNEL_OK")
</pallas_src>

<mosaic_0001>
module attributes {stable_mosaic.version = 11 : i64} {
  func.func @gnn_kernel(%arg0: memref<16x4xf32, #tpu.memory_space<vmem>>, %arg1: memref<64x128xf32, #tpu.memory_space<vmem>>, %arg2: memref<2x128xf32, #tpu.memory_space<vmem>>) attributes {dimension_semantics = [], scalar_prefetch = 0 : i64, scratch_operands = 0 : i64, tpu.core_type = #tpu.core_type<tc>} {
    %c0 = arith.constant 0 : index
    %c0_0 = arith.constant 0 : index
    %0 = vector.load %arg0[%c0, %c0_0] : memref<16x4xf32, #tpu.memory_space<vmem>>, vector<16x4xf32>
    %c34 = arith.constant 34 : index
    %c64 = arith.constant 64 : index
    %1 = vector.load %arg1[%c34, %c64] : memref<64x128xf32, #tpu.memory_space<vmem>>, vector<1x4xf32>
    %cst = arith.constant dense<0.000000e+00> : vector<1x16xf32>
    %2 = tpu.matmul %1, %0, %cst {dimension_numbers = #tpu.dot_dimension_numbers<[1], [1], [0], [0], [0, 0, 1, 0], [], []>} : vector<1x4xf32>, vector<16x4xf32>, vector<1x16xf32> -> vector<1x16xf32>
    %3 = vector.extract_strided_slice %0 {offsets = [0, 0], sizes = [16, 1], strides = [1, 1]} : vector<16x4xf32> to vector<16x1xf32>
    %4 = vector.broadcast %3 : vector<16x1xf32> to vector<16x16xf32>
    %5 = vector.broadcast %2 : vector<1x16xf32> to vector<16x16xf32>
    %6 = arith.subf %4, %5 : vector<16x16xf32>
    %7 = math.absf %6 : vector<16x16xf32>
    %cst_1 = arith.constant 0.00277777785 : f32
    %8 = vector.broadcast %cst_1 : f32 to vector<16x16xf32>
    %9 = arith.mulf %7, %8 : vector<16x16xf32>
    %10 = math.floor %9 : vector<16x16xf32>
    %cst_2 = arith.constant 3.600000e+02 : f32
    %11 = vector.broadcast %cst_2 : f32 to vector<16x16xf32>
    %12 = arith.mulf %11, %10 : vector<16x16xf32>
    %13 = arith.subf %7, %12 : vector<16x16xf32>
    %cst_3 = arith.constant 3.600000e+02 : f32
    %14 = vector.broadcast %cst_3 : f32 to vector<16x16xf32>
    %15 = arith.subf %14, %13 : vector<16x16xf32>
    %16 = arith.minimumf %13, %15 : vector<16x16xf32>
    %c40 = arith.constant 40 : index
    %c40_4 = arith.constant 40 : index
    %17 = vector.load %arg1[%c40, %c40_4] : memref<64x128xf32, #tpu.memory_space<vmem>>, vector<16x16xf32>
    %cst_5 = arith.constant 1.000000e+01 : f32
    %18 = vector.broadcast %cst_5 : f32 to vector<16x16xf32>
    %19 = arith.cmpf olt, %16, %18 : vector<16x16xf32>
    %cst_6 = arith.constant 5.000000e-01 : f32
    %20 = vector.broadcast %cst_6 : f32 to vector<16x16xf32>
    %21 = arith.cmpf ogt, %17, %20 : vector<16x16xf32>
    %22 = arith.andi %19, %21 : vector<16x16xi1>
    %c35 = arith.constant 35 : index
    %c0_7 = arith.constant 0 : index
    %23 = vector.load %arg1[%c35, %c0_7] : memref<64x128xf32, #tpu.memory_space<vmem>>, vector<4x32xf32>
    %c34_8 = arith.constant 34 : index
    %c0_9 = arith.constant 0 : index
    %24 = vector.load %arg1[%c34_8, %c0_9] : memref<64x128xf32, #tpu.memory_space<vmem>>, vector<1x32xf32>
    %cst_10 = arith.constant dense<0.000000e+00> : vector<16x32xf32>
    %25 = tpu.matmul %0, %23, %cst_10 {dimension_numbers = #tpu.dot_dimension_numbers<[1], [0], [0], [1], [0, 0, 1, 1], [], []>} : vector<16x4xf32>, vector<4x32xf32>, vector<16x32xf32> -> vector<16x32xf32>
    %26 = vector.broadcast %24 : vector<1x32xf32> to vector<16x32xf32>
    %27 = arith.addf %25, %26 : vector<16x32xf32>
    %c0_11 = arith.constant 0 : index
    %c0_12 = arith.constant 0 : index
    %28 = vector.load %arg1[%c0_11, %c0_12] : memref<64x128xf32, #tpu.memory_space<vmem>>, vector<32x33xf32>
    %c32 = arith.constant 32 : index
    %c0_13 = arith.constant 0 : index
    %29 = vector.load %arg1[%c32, %c0_13] : memref<64x128xf32, #tpu.memory_space<vmem>>, vector<1x32xf32>
    %c33 = arith.constant 33 : index
    %c0_14 = arith.constant 0 : index
    %30 = vector.load %arg1[%c33, %c0_14] : memref<64x128xf32, #tpu.memory_space<vmem>>, vector<1x32xf32>
    %cst_15 = arith.constant dense<0.000000e+00> : vector<16x33xf32>
    %31 = tpu.matmul %27, %28, %cst_15 {dimension_numbers = #tpu.dot_dimension_numbers<[1], [0], [0], [1], [0, 0, 1, 1], [], []>} : vector<16x32xf32>, vector<32x33xf32>, vector<16x33xf32> -> vector<16x33xf32>
    %32 = vector.extract_strided_slice %31 {offsets = [0, 0], sizes = [16, 32], strides = [1, 1]} : vector<16x33xf32> to vector<16x32xf32>
    %33 = vector.extract_strided_slice %31 {offsets = [0, 32], sizes = [16, 1], strides = [1, 1]} : vector<16x33xf32> to vector<16x1xf32>
    %cst_16 = arith.constant dense<0.000000e+00> : vector<1x16xf32>
    %34 = tpu.matmul %29, %32, %cst_16 {dimension_numbers = #tpu.dot_dimension_numbers<[1], [1], [0], [0], [0, 0, 1, 0], [], []>} : vector<1x32xf32>, vector<16x32xf32>, vector<1x16xf32> -> vector<1x16xf32>
    %35 = vector.broadcast %33 : vector<16x1xf32> to vector<16x16xf32>
    %36 = vector.broadcast %34 : vector<1x16xf32> to vector<16x16xf32>
    %37 = arith.addf %35, %36 : vector<16x16xf32>
    %cst_17 = arith.constant 0.000000e+00 : f32
    %38 = vector.broadcast %cst_17 : f32 to vector<16x16xf32>
    %39 = arith.cmpf ogt, %37, %38 : vector<16x16xf32>
    %cst_18 = arith.constant 2.000000e-01 : f32
    %40 = vector.broadcast %cst_18 : f32 to vector<16x16xf32>
    %41 = arith.mulf %40, %37 : vector<16x16xf32>
    %42 = arith.select %39, %37, %41 : vector<16x16xi1>, vector<16x16xf32>
    %cst_19 = arith.constant -1.000000e+30 : f32
    %43 = vector.broadcast %cst_19 : f32 to vector<16x16xf32>
    %44 = arith.select %22, %42, %43 : vector<16x16xi1>, vector<16x16xf32>
    %cst_20 = arith.constant dense<0xFF800000> : vector<16xf32>
    %45 = vector.multi_reduction <maximumf>, %44, %cst_20 [1] : vector<16x16xf32> to vector<16xf32>
    %46 = vector.shape_cast %45 : vector<16xf32> to vector<16x1xf32>
    %47 = vector.broadcast %46 : vector<16x1xf32> to vector<16x16xf32>
    %48 = arith.subf %44, %47 : vector<16x16xf32>
    %49 = math.exp %48 : vector<16x16xf32>
    %cst_21 = arith.constant dense<0.000000e+00> : vector<16xf32>
    %50 = vector.multi_reduction <add>, %49, %cst_21 [1] : vector<16x16xf32> to vector<16xf32>
    %51 = vector.shape_cast %50 : vector<16xf32> to vector<16x1xf32>
    %52 = tpu.reciprocal %51 {approx = true} : vector<16x1xf32> -> vector<16x1xf32>
    %53 = vector.broadcast %52 : vector<16x1xf32> to vector<16x16xf32>
    %54 = arith.mulf %49, %53 : vector<16x16xf32>
    %cst_22 = arith.constant dense<0.000000e+00> : vector<16x32xf32>
    %55 = tpu.matmul %54, %32, %cst_22 {dimension_numbers = #tpu.dot_dimension_numbers<[1], [0], [0], [1], [0, 0, 1, 1], [], []>} : vector<16x16xf32>, vector<16x32xf32>, vector<16x32xf32> -> vector<16x32xf32>
    %56 = vector.broadcast %30 : vector<1x32xf32> to vector<16x32xf32>
    %57 = arith.addf %55, %56 : vector<16x32xf32>
    %cst_23 = arith.constant 0.000000e+00 : f32
    %58 = vector.broadcast %cst_23 : f32 to vector<16x32xf32>
    %59 = arith.maximumf %57, %58 : vector<16x32xf32>
    %c0_24 = arith.constant 0 : index
    %c40_25 = arith.constant 40 : index
    %60 = vector.load %arg1[%c0_24, %c40_25] : memref<64x128xf32, #tpu.memory_space<vmem>>, vector<32x33xf32>
    %c32_26 = arith.constant 32 : index
    %c40_27 = arith.constant 40 : index
    %61 = vector.load %arg1[%c32_26, %c40_27] : memref<64x128xf32, #tpu.memory_space<vmem>>, vector<1x32xf32>
    %c33_28 = arith.constant 33 : index
    %c40_29 = arith.constant 40 : index
    %62 = vector.load %arg1[%c33_28, %c40_29] : memref<64x128xf32, #tpu.memory_space<vmem>>, vector<1x32xf32>
    %cst_30 = arith.constant dense<0.000000e+00> : vector<16x33xf32>
    %63 = tpu.matmul %59, %60, %cst_30 {dimension_numbers = #tpu.dot_dimension_numbers<[1], [0], [0], [1], [0, 0, 1, 1], [], []>} : vector<16x32xf32>, vector<32x33xf32>, vector<16x33xf32> -> vector<16x33xf32>
    %64 = vector.extract_strided_slice %63 {offsets = [0, 0], sizes = [16, 32], strides = [1, 1]} : vector<16x33xf32> to vector<16x32xf32>
    %65 = vector.extract_strided_slice %63 {offsets = [0, 32], sizes = [16, 1], strides = [1, 1]} : vector<16x33xf32> to vector<16x1xf32>
    %cst_31 = arith.constant dense<0.000000e+00> : vector<1x16xf32>
    %66 = tpu.matmul %61, %64, %cst_31 {dimension_numbers = #tpu.dot_dimension_numbers<[1], [1], [0], [0], [0, 0, 1, 0], [], []>} : vector<1x32xf32>, vector<16x32xf32>, vector<1x16xf32> -> vector<1x16xf32>
    %67 = vector.broadcast %65 : vector<16x1xf32> to vector<16x16xf32>
    %68 = vector.broadcast %66 : vector<1x16xf32> to vector<16x16xf32>
    %69 = arith.addf %67, %68 : vector<16x16xf32>
    %cst_32 = arith.constant 0.000000e+00 : f32
    %70 = vector.broadcast %cst_32 : f32 to vector<16x16xf32>
    %71 = arith.cmpf ogt, %69, %70 : vector<16x16xf32>
    %cst_33 = arith.constant 2.000000e-01 : f32
    %72 = vector.broadcast %cst_33 : f32 to vector<16x16xf32>
    %73 = arith.mulf %72, %69 : vector<16x16xf32>
    %74 = arith.select %71, %69, %73 : vector<16x16xi1>, vector<16x16xf32>
    %cst_34 = arith.constant -1.000000e+30 : f32
    %75 = vector.broadcast %cst_34 : f32 to vector<16x16xf32>
    %76 = arith.select %22, %74, %75 : vector<16x16xi1>, vector<16x16xf32>
    %cst_35 = arith.constant dense<0xFF800000> : vector<16xf32>
    %77 = vector.multi_reduction <maximumf>, %76, %cst_35 [1] : vector<16x16xf32> to vector<16xf32>
    %78 = vector.shape_cast %77 : vector<16xf32> to vector<16x1xf32>
    %79 = vector.broadcast %78 : vector<16x1xf32> to vector<16x16xf32>
    %80 = arith.subf %76, %79 : vector<16x16xf32>
    %81 = math.exp %80 : vector<16x16xf32>
    %cst_36 = arith.constant dense<0.000000e+00> : vector<16xf32>
    %82 = vector.multi_reduction <add>, %81, %cst_36 [1] : vector<16x16xf32> to vector<16xf32>
    %83 = vector.shape_cast %82 : vector<16xf32> to vector<16x1xf32>
    %84 = tpu.reciprocal %83 {approx = true} : vector<16x1xf32> -> vector<16x1xf32>
    %85 = vector.broadcast %84 : vector<16x1xf32> to vector<16x16xf32>
    %86 = arith.mulf %81, %85 : vector<16x16xf32>
    %cst_37 = arith.constant dense<0.000000e+00> : vector<16x32xf32>
    %87 = tpu.matmul %86, %64, %cst_37 {dimension_numbers = #tpu.dot_dimension_numbers<[1], [0], [0], [1], [0, 0, 1, 1], [], []>} : vector<16x16xf32>, vector<16x32xf32>, vector<16x32xf32> -> vector<16x32xf32>
    %88 = vector.broadcast %62 : vector<1x32xf32> to vector<16x32xf32>
    %89 = arith.addf %87, %88 : vector<16x32xf32>
    %cst_38 = arith.constant 0.000000e+00 : f32
    %90 = vector.broadcast %cst_38 : f32 to vector<16x32xf32>
    %91 = arith.maximumf %89, %90 : vector<16x32xf32>
    %c0_39 = arith.constant 0 : index
    %c80 = arith.constant 80 : index
    %92 = vector.load %arg1[%c0_39, %c80] : memref<64x128xf32, #tpu.memory_space<vmem>>, vector<32x33xf32>
    %c32_40 = arith.constant 32 : index
    %c80_41 = arith.constant 80 : index
    %93 = vector.load %arg1[%c32_40, %c80_41] : memref<64x128xf32, #tpu.memory_space<vmem>>, vector<1x32xf32>
    %c33_42 = arith.constant 33 : index
    %c80_43 = arith.constant 80 : index
    %94 = vector.load %arg1[%c33_42, %c80_43] : memref<64x128xf32, #tpu.memory_space<vmem>>, vector<1x32xf32>
    %cst_44 = arith.constant dense<0.000000e+00> : vector<16x33xf32>
    %95 = tpu.matmul %91, %92, %cst_44 {dimension_numbers = #tpu.dot_dimension_numbers<[1], [0], [0], [1], [0, 0, 1, 1], [], []>} : vector<16x32xf32>, vector<32x33xf32>, vector<16x33xf32> -> vector<16x33xf32>
    %96 = vector.extract_strided_slice %95 {offsets = [0, 0], sizes = [16, 32], strides = [1, 1]} : vector<16x33xf32> to vector<16x32xf32>
    %97 = vector.extract_strided_slice %95 {offsets = [0, 32], sizes = [16, 1], strides = [1, 1]} : vector<16x33xf32> to vector<16x1xf32>
    %cst_45 = arith.constant dense<0.000000e+00> : vector<1x16xf32>
    %98 = tpu.matmul %93, %96, %cst_45 {dimension_numbers = #tpu.dot_dimension_numbers<[1], [1], [0], [0], [0, 0, 1, 0], [], []>} : vector<1x32xf32>, vector<16x32xf32>, vector<1x16xf32> -> vector<1x16xf32>
    %99 = vector.broadcast %97 : vector<16x1xf32> to vector<16x16xf32>
    %100 = vector.broadcast %98 : vector<1x16xf32> to vector<16x16xf32>
    %101 = arith.addf %99, %100 : vector<16x16xf32>
    %cst_46 = arith.constant 0.000000e+00 : f32
    %102 = vector.broadcast %cst_46 : f32 to vector<16x16xf32>
    %103 = arith.cmpf ogt, %101, %102 : vector<16x16xf32>
    %cst_47 = arith.constant 2.000000e-01 : f32
    %104 = vector.broadcast %cst_47 : f32 to vector<16x16xf32>
    %105 = arith.mulf %104, %101 : vector<16x16xf32>
    %106 = arith.select %103, %101, %105 : vector<16x16xi1>, vector<16x16xf32>
    %cst_48 = arith.constant -1.000000e+30 : f32
    %107 = vector.broadcast %cst_48 : f32 to vector<16x16xf32>
    %108 = arith.select %22, %106, %107 : vector<16x16xi1>, vector<16x16xf32>
    %cst_49 = arith.constant dense<0xFF800000> : vector<16xf32>
    %109 = vector.multi_reduction <maximumf>, %108, %cst_49 [1] : vector<16x16xf32> to vector<16xf32>
    %110 = vector.shape_cast %109 : vector<16xf32> to vector<16x1xf32>
    %111 = vector.broadcast %110 : vector<16x1xf32> to vector<16x16xf32>
    %112 = arith.subf %108, %111 : vector<16x16xf32>
    %113 = math.exp %112 : vector<16x16xf32>
    %cst_50 = arith.constant dense<0.000000e+00> : vector<16xf32>
    %114 = vector.multi_reduction <add>, %113, %cst_50 [1] : vector<16x16xf32> to vector<16xf32>
    %115 = vector.shape_cast %114 : vector<16xf32> to vector<16x1xf32>
    %116 = tpu.reciprocal %115 {approx = true} : vector<16x1xf32> -> vector<16x1xf32>
    %117 = vector.broadcast %116 : vector<16x1xf32> to vector<16x16xf32>
    %118 = arith.mulf %113, %117 : vector<16x16xf32>
    %cst_51 = arith.constant dense<0.000000e+00> : vector<16x32xf32>
    %119 = tpu.matmul %118, %96, %cst_51 {dimension_numbers = #tpu.dot_dimension_numbers<[1], [0], [0], [1], [0, 0, 1, 1], [], []>} : vector<16x16xf32>, vector<16x32xf32>, vector<16x32xf32> -> vector<16x32xf32>
    %120 = vector.broadcast %94 : vector<1x32xf32> to vector<16x32xf32>
    %121 = arith.addf %119, %120 : vector<16x32xf32>
    %cst_52 = arith.constant 0.000000e+00 : f32
    %122 = vector.broadcast %cst_52 : f32 to vector<16x32xf32>
    %123 = arith.maximumf %121, %122 : vector<16x32xf32>
    %c35_53 = arith.constant 35 : index
    %c40_54 = arith.constant 40 : index
    %124 = vector.load %arg1[%c35_53, %c40_54] : memref<64x128xf32, #tpu.memory_space<vmem>>, vector<2x16xf32>
    %cst_55 = arith.constant dense<0.000000e+00> : vector<2x32xf32>
    %125 = tpu.matmul %124, %123, %cst_55 {dimension_numbers = #tpu.dot_dimension_numbers<[1], [0], [0], [1], [0, 0, 1, 1], [], []>} : vector<2x16xf32>, vector<16x32xf32>, vector<2x32xf32> -> vector<2x32xf32>
    %c40_56 = arith.constant 40 : index
    %c8 = arith.constant 8 : index
    %126 = vector.load %arg1[%c40_56, %c8] : memref<64x128xf32, #tpu.memory_space<vmem>>, vector<16x32xf32>
    %c34_57 = arith.constant 34 : index
    %c40_58 = arith.constant 40 : index
    %127 = vector.load %arg1[%c34_57, %c40_58] : memref<64x128xf32, #tpu.memory_space<vmem>>, vector<1x16xf32>
    %cst_59 = arith.constant dense<0.000000e+00> : vector<2x16xf32>
    %128 = tpu.matmul %125, %126, %cst_59 {dimension_numbers = #tpu.dot_dimension_numbers<[1], [1], [0], [0], [0, 0, 1, 0], [], []>} : vector<2x32xf32>, vector<16x32xf32>, vector<2x16xf32> -> vector<2x16xf32>
    %129 = vector.broadcast %127 : vector<1x16xf32> to vector<2x16xf32>
    %130 = arith.addf %128, %129 : vector<2x16xf32>
    %cst_60 = arith.constant 0.000000e+00 : f32
    %131 = vector.broadcast %cst_60 : f32 to vector<2x16xf32>
    %132 = arith.maximumf %130, %131 : vector<2x16xf32>
    %c40_61 = arith.constant 40 : index
    %c0_62 = arith.constant 0 : index
    %133 = vector.load %arg1[%c40_61, %c0_62] : memref<64x128xf32, #tpu.memory_space<vmem>>, vector<16x128xf32>
    %c56 = arith.constant 56 : index
    %c0_63 = arith.constant 0 : index
    %134 = vector.load %arg1[%c56, %c0_63] : memref<64x128xf32, #tpu.memory_space<vmem>>, vector<1x128xf32>
    %cst_64 = arith.constant dense<0.000000e+00> : vector<2x128xf32>
    %135 = tpu.matmul %132, %133, %cst_64 {dimension_numbers = #tpu.dot_dimension_numbers<[1], [0], [0], [1], [0, 0, 1, 1], [], []>} : vector<2x16xf32>, vector<16x128xf32>, vector<2x128xf32> -> vector<2x128xf32>
    %136 = vector.broadcast %134 : vector<1x128xf32> to vector<2x128xf32>
    %137 = arith.addf %135, %136 : vector<2x128xf32>
    %c0_65 = arith.constant 0 : index
    %c0_66 = arith.constant 0 : index
    %138 = vector.load %arg2[%c0_65, %c0_66] : memref<2x128xf32, #tpu.memory_space<vmem>>, vector<2x128xf32>
    tpu.vector_store %arg2[%c0_65, %c0_66], %137 {strides = array<i32>} : memref<2x128xf32, #tpu.memory_space<vmem>>, vector<2x128xf32>,
    return
  }
}

</mosaic_0001>

<llo_original>
// kernel: gnn_forward.1
$region0: #{gnn_forward.1}
  #allocation0 [shape = 'u32[]', space=smem, size = 0x4, offset = 0x4, fixed_abs, tag = 'smem constant byte address 0x4 - core index']
  #allocation1 [shape = 'u32[144,128]{1,0:T(1,128)}', space=vmem, size = 0x12000, scoped, tag = 'internal scratch']
  %s0 = inlined_call_operand.vmem [shape: f32[16,4], index: 0, kind: input, shape index: {}]
  %s1 = inlined_call_operand.hbm [shape: f32[64,128], index: 1, kind: input, shape index: {}]
  %s2 = inlined_call_operand.hbm [shape: f32[2,128], index: 2, kind: output, shape index: {}]
  %s3 = sld [smem:[#allocation0]]
  $region22: #{gnn_forward.1} parent=0
    _
  %s5 = ssub.s32 1, %s3
  %s6 = scalar_select 0, %s5, %s3
  $region1: #{gnn_forward.1} parent=0
    #allocation2 [shape = 'u8[32768]{0}', space=vmem, size = 0x8000, scoped, tag = 'input window, operand 1, single buffered']
    #allocation3 [shape = 's32[1]{0}', space=sflag, size = 0x4, scoped, tag = 'scoped memory for gnn_forward.1']
    #allocation4 [shape = 's32[1]{0}', space=sflag, size = 0x4, scoped, tag = 'scoped memory for gnn_forward.1']
    #allocation5 [shape = 'u8[1024]{0}', space=vmem, size = 0x400, scoped, tag = 'output window, operand 0, single buffered']
    %7 = vsyncpa [#allocation3], 0
    %8 = vsyncpa [#allocation4], 0
    // Predicated region
    $region2: #{gnn_forward.1} parent=1 // pred_check
      _
    $region3: #{gnn_forward.1} parent=1 // pred_check_branch
      %10 = sbr.rel (0) target = $region5
    $region4: #{gnn_forward.1} parent=1 // pred_region
      _
    $region5: #{gnn_forward.1} parent=1 // pred_fallthru
      _
    // Predicated region
    $region6: #{gnn_forward.1} parent=1 // pred_check
      _
    $region7: #{gnn_forward.1} parent=1 // pred_check_branch
      %12 = sbr.rel (0) target = $region9
    $region8: #{gnn_forward.1} parent=1 // pred_region
      %s14 = ssub.s32 1024, 1024
      %15 = vsyncadd [#allocation3], %s14
      %s16 = sshll.u32 [#allocation2], 4
      %s17 = int_to_ptr.vmem [resolvable:$true] %s16
      %22 = dma.hbm_to_vmem [thread:$0]  %s1, 1024, %s17, [#allocation3], 128, 128, 8
    $region9: #{gnn_forward.1} parent=1 // pred_fallthru
      _
    // Predicated region
    $region10: #{gnn_forward.1} parent=1 // pred_check
      _
    $region11: #{gnn_forward.1} parent=1 // pred_check_branch
      %24 = sbr.rel (0) target = $region13
    $region12: #{gnn_forward.1} parent=1 // pred_region
      %25 = dma.done [#allocation3], 1024
    $region13: #{gnn_forward.1} parent=1 // pred_fallthru
      _
    %v26 = vld [vmem:[%s0] sm:$0xff]
    %v27 = vld [vmem:[%s0 + $0x8] sm:$0xff]
    %v28 = vld [vmem:[#allocation2 + $0x22] sm:$0x1]
    %30 = vrot.lane.b32.xlu0 %v28, 64
    %v31 = vpop.permute.xlu0 %30
    %vm32 = vcmask 31744
    %v33 = vsel %vm32, %v31, 0
    %v36 = vsel %vm32, %v26, 0
    %v39 = vsel %vm32, %v27, 0
    %41 = vmatprep.subr.mxu0 0.0
    %42 = vmatpush1.xpose.msra.mxu0 0.0
    %43 = vmatprep.subr.mxu0 0.0
    %44 = vmatpush1.xpose.msra.mxu0 0.0
    %45 = vmatprep.subr.mxu0 0.0
    %46 = vmatpush1.xpose.msra.mxu0 0.0
    %47 = vmatprep.subr.mxu0 0.0
    %48 = vmatpush1.xpose.msra.mxu0 0.0
    %49 = vmatprep.subr.mxu0 0.0
    %50 = vmatpush1.xpose.msra.mxu0 0.0
    %51 = vmatprep.subr.mxu0 0.0
    %52 = vmatpush1.xpose.msra.mxu0 0.0
    %53 = vmatprep.subr.mxu0 0.0
    %54 = vmatpush1.xpose.msra.mxu0 0.0
    %55 = vmatprep.subr.mxu0 0.0
    %56 = vmatpush1.xpose.msra.mxu0 0.0
    %57 = vmatprep.subr.mxu0 0.0
    %58 = vmatpush1.xpose.msra.mxu0 0.0
    %59 = vmatprep.subr.mxu0 0.0
    %60 = vmatpush1.xpose.msra.mxu0 0.0
    %61 = vmatprep.subr.mxu0 0.0
    %62 = vmatpush1.xpose.msra.mxu0 0.0
    %63 = vmatprep.subr.mxu0 0.0
    %64 = vmatpush1.xpose.msra.mxu0 0.0
    %65 = vmatprep.subr.mxu0 0.0
    %66 = vmatpush1.xpose.msra.mxu0 0.0
    %67 = vmatprep.subr.mxu0 0.0
    %68 = vmatpush1.xpose.msra.mxu0 0.0
    %69 = vmatprep.subr.mxu0 0.0
    %70 = vmatpush1.xpose.msra.mxu0 %v39
    %71 = vmatprep.subr.mxu0 0.0
    %72 = vmatpush1.xpose.msra.mxu0 %v36
    %73 = vmatprep.subr.mxu0 0.0
    %74 = vmatpush2.xpose.msra.mxu0 0.0
    %75 = vmatprep.subr.mxu0 0.0
    %76 = vmatpush2.xpose.msra.mxu0 0.0
    %77 = vmatprep.subr.mxu0 0.0
    %78 = vmatpush2.xpose.msra.mxu0 0.0
    %79 = vmatprep.subr.mxu0 0.0
    %80 = vmatpush2.xpose.msra.mxu0 0.0
    %81 = vmatprep.subr.mxu0 0.0
    %82 = vmatpush2.xpose.msra.mxu0 0.0
    %83 = vmatprep.subr.mxu0 0.0
    %84 = vmatpush2.xpose.msra.mxu0 0.0
    %85 = vmatprep.subr.mxu0 0.0
    %86 = vmatpush2.xpose.msra.mxu0 0.0
    %87 = vmatprep.subr.mxu0 0.0
    %88 = vmatpush2.xpose.msra.mxu0 0.0
    %89 = vmatprep.subr.mxu0 0.0
    %90 = vmatpush2.xpose.msra.mxu0 0.0
    %91 = vmatprep.subr.mxu0 0.0
    %92 = vmatpush2.xpose.msra.mxu0 0.0
    %93 = vmatprep.subr.mxu0 0.0
    %94 = vmatpush2.xpose.msra.mxu0 0.0
    %95 = vmatprep.subr.mxu0 0.0
    %96 = vmatpush2.xpose.msra.mxu0 0.0
    %97 = vmatprep.subr.mxu0 0.0
    %98 = vmatpush2.xpose.msra.mxu0 0.0
    %99 = vmatprep.subr.mxu0 0.0
    %100 = vmatpush2.xpose.msra.mxu0 0.0
    %101 = vmatprep.subr.mxu0 0.0
    %102 = vmatpush2.xpose.msra.mxu0 0.0
    %103 = vmatprep.subr.mxu0 0.0
    %104 = vmatpush2.xpose.msra.mxu0 0.0
    %105 = vmatprep.mubr.f32.mxu0 0.0
    %106 = vmatmul.mubr.f32.gmra.mxu0 %v33
    %v107 = vpop.f32.mrf.mxu0
    %v108 = vadd.f32 0.0, %v107
    %v109 = vpop.f32.mrf.mxu0
    %110 = vdwg.mxu0
    %111 = vset.pattern.permute.xlu0 0
    %112 = vperm.xlu0 %111, %v26
    %v113 = vpop.permute.xlu0 %112
    %115 = vset.pattern.permute.xlu0 0
    %116 = vperm.xlu0 %115, %v27
    %v117 = vpop.permute.xlu0 %116
    %v119 = vlaneseq
    %v120 = vshrl.u32 %v119, 7
    %v121 = vsub.s32 0, %v120
    %v122 = vrot.slane %v108, %v121
    %v123 = vsub.f32 %v113, %v122
    %v124 = vsub.f32 %v117, %v122
    %v125 = vand.u32 2147483647, %v123
    %v126 = vand.u32 2147483647, %v124
    %v127 = vmul.f32 %v125, 0.0027777778
    %v128 = vmul.f32 %v126, 0.0027777778
    %v129 = vfloor.f32 %v127
    %v130 = vfloor.f32 %v128
    %v131 = vmul.f32 %v129, 360.0
    %v132 = vmul.f32 %v130, 360.0
    %v133 = vsub.f32 %v125, %v131
    %v134 = vsub.f32 %v126, %v132
    %v135 = vsub.f32 360.0, %v133
    %v136 = vsub.f32 360.0, %v134
    %v137 = vmin.f32 %v133, %v135
    %v138 = vmin.f32 %v134, %v136
    %v139 = vld [vmem:[#allocation2 + $0x28] sm:$0xff]
    %v140 = vld [vmem:[#allocation2 + $0x30] sm:$0xff]
    %vm141 = vcmp.lt.f32.partialorder %v137, 10.0
    %vm142 = vcmp.lt.f32.partialorder %v138, 10.0
    %vm143 = vcmp.gt.f32.partialorder %v139, 0.5
    %vm144 = vcmp.gt.f32.partialorder %v140, 0.5
    %v145 = vsel %vm143, 1, 0
    %v146 = vsel %vm144, 1, 0
    %147 = vrot.lane.b32.xlu0 %v145, 88
    %v148 = vpop.permute.xlu0 %147
    %149 = vrot.lane.b32.xlu0 %v146, 88
    %v150 = vpop.permute.xlu0 %149
    %vm151 = vcmp.ne.s32.totalorder %v148, 0
    %vm152 = vcmp.ne.s32.totalorder %v150, 0
    %vm153 = vmand %vm141, %vm151
    %vm154 = vmand %vm142, %vm152
    %v155 = vld [vmem:[#allocation2 + $0x23] sm:$0xf]
    %v156 = vlaneseq
    %v157 = vshrl.u32 %v156, 7
    %v158 = vsub.s32 0, %v157
    %v159 = vrot.slane %v28, %v158
    %vm160 = vcmask 1043456
    %v162 = vsel %vm160, %v155, 0
    %164 = vmatprep.subr.mxu0 0.0
    %165 = vmatpush1.msra.mxu0 0.0
    %166 = vmatprep.subr.mxu0 0.0
    %167 = vmatpush1.msra.mxu0 0.0
    %168 = vmatprep.subr.mxu0 0.0
    %169 = vmatpush1.msra.mxu0 0.0
    %170 = vmatprep.subr.mxu0 0.0
    %171 = vmatpush1.msra.mxu0 0.0
    %172 = vmatprep.subr.mxu0 0.0
    %173 = vmatpush1.msra.mxu0 0.0
    %174 = vmatprep.subr.mxu0 0.0
    %175 = vmatpush1.msra.mxu0 0.0
    %176 = vmatprep.subr.mxu0 0.0
    %177 = vmatpush1.msra.mxu0 0.0
    %178 = vmatprep.subr.mxu0 0.0
    %179 = vmatpush1.msra.mxu0 0.0
    %180 = vmatprep.subr.mxu0 0.0
    %181 = vmatpush1.msra.mxu0 0.0
    %182 = vmatprep.subr.mxu0 0.0
    %183 = vmatpush1.msra.mxu0 0.0
    %184 = vmatprep.subr.mxu0 0.0
    %185 = vmatpush1.msra.mxu0 0.0
    %186 = vmatprep.subr.mxu0 0.0
    %187 = vmatpush1.msra.mxu0 0.0
    %188 = vmatprep.subr.mxu0 0.0
    %189 = vmatpush1.msra.mxu0 0.0
    %190 = vmatprep.subr.mxu0 0.0
    %191 = vmatpush1.msra.mxu0 0.0
    %192 = vmatprep.subr.mxu0 0.0
    %193 = vmatpush1.msra.mxu0 0.0
    %194 = vmatprep.subr.mxu0 0.0
    %195 = vmatpush1.msra.mxu0 %v162
    %196 = vmatprep.subr.mxu0 0.0
    %197 = vmatpush2.msra.mxu0 0.0
    %198 = vmatprep.subr.mxu0 0.0
    %199 = vmatpush2.msra.mxu0 0.0
    %200 = vmatprep.subr.mxu0 0.0
    %201 = vmatpush2.msra.mxu0 0.0
    %202 = vmatprep.subr.mxu0 0.0
    %203 = vmatpush2.msra.mxu0 0.0
    %204 = vmatprep.subr.mxu0 0.0
    %205 = vmatpush2.msra.mxu0 0.0
    %206 = vmatprep.subr.mxu0 0.0
    %207 = vmatpush2.msra.mxu0 0.0
    %208 = vmatprep.subr.mxu0 0.0
    %209 = vmatpush2.msra.mxu0 0.0
    %210 = vmatprep.subr.mxu0 0.0
    %211 = vmatpush2.msra.mxu0 0.0
    %212 = vmatprep.subr.mxu0 0.0
    %213 = vmatpush2.msra.mxu0 0.0
    %214 = vmatprep.subr.mxu0 0.0
    %215 = vmatpush2.msra.mxu0 0.0
    %216 = vmatprep.subr.mxu0 0.0
    %217 = vmatpush2.msra.mxu0 0.0
    %218 = vmatprep.subr.mxu0 0.0
    %219 = vmatpush2.msra.mxu0 0.0
    %220 = vmatprep.subr.mxu0 0.0
    %221 = vmatpush2.msra.mxu0 0.0
    %222 = vmatprep.subr.mxu0 0.0
    %223 = vmatpush2.msra.mxu0 0.0
    %224 = vmatprep.subr.mxu0 0.0
    %225 = vmatpush2.msra.mxu0 0.0
    %226 = vmatprep.subr.mxu0 0.0
    %227 = vmatpush2.msra.mxu0 0.0
    %228 = vmatprep.mubr.f32.mxu0 0.0
    %229 = vmatmul.mubr.f32.gmra.mxu0 %v36
    %v230 = vpop.f32.mrf.mxu0
    %v231 = vadd.f32 %v159, %v230
    %v232 = vpop.f32.mrf.mxu0
    %233 = vmatprep.mubr.f32.mxu0 0.0
    %234 = vmatmul.mubr.f32.gmra.mxu0 %v39
    %v235 = vpop.f32.mrf.mxu0
    %v236 = vadd.f32 %v159, %v235
    %v237 = vpop.f32.mrf.mxu0
    %238 = vdwg.mxu0
    %v239 = vld [vmem:[#allocation2] sm:$0xff]
    %v240 = vld [vmem:[#allocation2 + $0x8] sm:$0xff]
    %v241 = vld [vmem:[#allocation2 + $0x10] sm:$0xff]
    %v242 = vld [vmem:[#allocation2 + $0x18] sm:$0xff]
    %v243 = vld [vmem:[#allocation2 + $0x20] sm:$0x1]
    %v244 = vld [vmem:[#allocation2 + $0x21] sm:$0x1]
    %vm245 = vcmask 261120
    %v247 = vsel %vm245, %v231, 0
    %v250 = vsel %vm245, %v236, 0
    %252 = vmatprep.subr.mxu0 0.0
    %253 = vmatpush1.msra.mxu0 0.0
    %254 = vmatprep.subr.mxu0 0.0
    %255 = vmatpush1.msra.mxu0 0.0
    %256 = vmatprep.subr.mxu0 0.0
    %257 = vmatpush1.msra.mxu0 0.0
    %258 = vmatprep.subr.mxu0 0.0
    %259 = vmatpush1.msra.mxu0 0.0
    %260 = vmatprep.subr.mxu0 0.0
    %261 = vmatpush1.msra.mxu0 0.0
    %262 = vmatprep.subr.mxu0 0.0
    %263 = vmatpush1.msra.mxu0 0.0
    %264 = vmatprep.subr.mxu0 0.0
    %265 = vmatpush1.msra.mxu0 0.0
    %266 = vmatprep.subr.mxu0 0.0
    %267 = vmatpush1.msra.mxu0 0.0
    %268 = vmatprep.subr.mxu0 0.0
    %269 = vmatpush1.msra.mxu0 0.0
    %270 = vmatprep.subr.mxu0 0.0
    %271 = vmatpush1.msra.mxu0 0.0
    %272 = vmatprep.subr.mxu0 0.0
    %273 = vmatpush1.msra.mxu0 0.0
    %274 = vmatprep.subr.mxu0 0.0
    %275 = vmatpush1.msra.mxu0 0.0
    %276 = vmatprep.subr.mxu0 0.0
    %277 = vmatpush1.msra.mxu0 %v242
    %278 = vmatprep.subr.mxu0 0.0
    %279 = vmatpush1.msra.mxu0 %v241
    %280 = vmatprep.subr.mxu0 0.0
    %281 = vmatpush1.msra.mxu0 %v240
    %282 = vmatprep.subr.mxu0 0.0
    %283 = vmatpush1.msra.mxu0 %v239
    %284 = vmatprep.subr.mxu0 0.0
    %285 = vmatpush2.msra.mxu0 0.0
    %286 = vmatprep.subr.mxu0 0.0
    %287 = vmatpush2.msra.mxu0 0.0
    %288 = vmatprep.subr.mxu0 0.0
    %289 = vmatpush2.msra.mxu0 0.0
    %290 = vmatprep.subr.mxu0 0.0
    %291 = vmatpush2.msra.mxu0 0.0
    %292 = vmatprep.subr.mxu0 0.0
    %293 = vmatpush2.msra.mxu0 0.0
    %294 = vmatprep.subr.mxu0 0.0
    %295 = vmatpush2.msra.mxu0 0.0
    %296 = vmatprep.subr.mxu0 0.0
    %297 = vmatpush2.msra.mxu0 0.0
    %298 = vmatprep.subr.mxu0 0.0
    %299 = vmatpush2.msra.mxu0 0.0
    %300 = vmatprep.subr.mxu0 0.0
    %301 = vmatpush2.msra.mxu0 0.0
    %302 = vmatprep.subr.mxu0 0.0
    %303 = vmatpush2.msra.mxu0 0.0
    %304 = vmatprep.subr.mxu0 0.0
    %305 = vmatpush2.msra.mxu0 0.0
    %306 = vmatprep.subr.mxu0 0.0
    %307 = vmatpush2.msra.mxu0 0.0
    %308 = vmatprep.subr.mxu0 0.0
    %309 = vmatpush2.msra.mxu0 0.0
    %310 = vmatprep.subr.mxu0 0.0
    %311 = vmatpush2.msra.mxu0 0.0
    %312 = vmatprep.subr.mxu0 0.0
    %313 = vmatpush2.msra.mxu0 0.0
    %314 = vmatprep.subr.mxu0 0.0
    %315 = vmatpush2.msra.mxu0 0.0
    %316 = vmatprep.mubr.f32.mxu0 0.0
    %317 = vmatmul.mubr.f32.gmra.mxu0 %v247
    %v318 = vpop.f32.mrf.mxu0
    %v319 = vadd.f32 0.0, %v318
    %v320 = vpop.f32.mrf.mxu0
    %321 = vmatprep.mubr.f32.mxu0 0.0
    %322 = vmatmul.mubr.f32.gmra.mxu0 %v250
    %v323 = vpop.f32.mrf.mxu0
    %v324 = vadd.f32 0.0, %v323
    %v325 = vpop.f32.mrf.mxu0
    %326 = vdwg.mxu0
    %v328 = vsel %vm245, %v243, 0
    %v331 = vsel %vm245, %v319, 0
    %v334 = vsel %vm245, %v324, 0
    %336 = vmatprep.subr.mxu0 0.0
    %337 = vmatpush1.xpose.msra.mxu0 0.0
    %338 = vmatprep.subr.mxu0 0.0
    %339 = vmatpush1.xpose.msra.mxu0 0.0
    %340 = vmatprep.subr.mxu0 0.0
    %341 = vmatpush1.xpose.msra.mxu0 0.0
    %342 = vmatprep.subr.mxu0 0.0
    %343 = vmatpush1.xpose.msra.mxu0 0.0
    %344 = vmatprep.subr.mxu0 0.0
    %345 = vmatpush1.xpose.msra.mxu0 0.0
    %346 = vmatprep.subr.mxu0 0.0
    %347 = vmatpush1.xpose.msra.mxu0 0.0
    %348 = vmatprep.subr.mxu0 0.0
    %349 = vmatpush1.xpose.msra.mxu0 0.0
    %350 = vmatprep.subr.mxu0 0.0
    %351 = vmatpush1.xpose.msra.mxu0 0.0
    %352 = vmatprep.subr.mxu0 0.0
    %353 = vmatpush1.xpose.msra.mxu0 0.0
    %354 = vmatprep.subr.mxu0 0.0
    %355 = vmatpush1.xpose.msra.mxu0 0.0
    %356 = vmatprep.subr.mxu0 0.0
    %357 = vmatpush1.xpose.msra.mxu0 0.0
    %358 = vmatprep.subr.mxu0 0.0
    %359 = vmatpush1.xpose.msra.mxu0 0.0
    %360 = vmatprep.subr.mxu0 0.0
    %361 = vmatpush1.xpose.msra.mxu0 0.0
    %362 = vmatprep.subr.mxu0 0.0
    %363 = vmatpush1.xpose.msra.mxu0 0.0
    %364 = vmatprep.subr.mxu0 0.0
    %365 = vmatpush1.xpose.msra.mxu0 %v334
    %366 = vmatprep.subr.mxu0 0.0
    %367 = vmatpush1.xpose.msra.mxu0 %v331
    %368 = vmatprep.subr.mxu0 0.0
    %369 = vmatpush2.xpose.msra.mxu0 0.0
    %370 = vmatprep.subr.mxu0 0.0
    %371 = vmatpush2.xpose.msra.mxu0 0.0
    %372 = vmatprep.subr.mxu0 0.0
    %373 = vmatpush2.xpose.msra.mxu0 0.0
    %374 = vmatprep.subr.mxu0 0.0
    %375 = vmatpush2.xpose.msra.mxu0 0.0
    %376 = vmatprep.subr.mxu0 0.0
    %377 = vmatpush2.xpose.msra.mxu0 0.0
    %378 = vmatprep.subr.mxu0 0.0
    %379 = vmatpush2.xpose.msra.mxu0 0.0
    %380 = vmatprep.subr.mxu0 0.0
    %381 = vmatpush2.xpose.msra.mxu0 0.0
    %382 = vmatprep.subr.mxu0 0.0
    %383 = vmatpush2.xpose.msra.mxu0 0.0
    %384 = vmatprep.subr.mxu0 0.0
    %385 = vmatpush2.xpose.msra.mxu0 0.0
    %386 = vmatprep.subr.mxu0 0.0
    %387 = vmatpush2.xpose.msra.mxu0 0.0
    %388 = vmatprep.subr.mxu0 0.0
    %389 = vmatpush2.xpose.msra.mxu0 0.0
    %390 = vmatprep.subr.mxu0 0.0
    %391 = vmatpush2.xpose.msra.mxu0 0.0
    %392 = vmatprep.subr.mxu0 0.0
    %393 = vmatpush2.xpose.msra.mxu0 0.0
    %394 = vmatprep.subr.mxu0 0.0
    %395 = vmatpush2.xpose.msra.mxu0 0.0
    %396 = vmatprep.subr.mxu0 0.0
    %397 = vmatpush2.xpose.msra.mxu0 0.0
    %398 = vmatprep.subr.mxu0 0.0
    %399 = vmatpush2.xpose.msra.mxu0 0.0
    %400 = vmatprep.mubr.f32.mxu0 0.0
    %401 = vmatmul.mubr.f32.gmra.mxu0 %v328
    %v402 = vpop.f32.mrf.mxu0
    %v403 = vadd.f32 0.0, %v402
    %v404 = vpop.f32.mrf.mxu0
    %405 = vdwg.mxu0
    %406 = vset.pattern.permute.xlu0 32
    %407 = vperm.xlu0 %406, %v319
    %v408 = vpop.permute.xlu0 %407
    %410 = vset.pattern.permute.xlu0 32
    %411 = vperm.xlu0 %410, %v324
    %v412 = vpop.permute.xlu0 %411
    %v414 = vlaneseq
    %v415 = vshrl.u32 %v414, 7
    %v416 = vsub.s32 0, %v415
    %v417 = vrot.slane %v403, %v416
    %v418 = vadd.f32 %v408, %v417
    %v419 = vadd.f32 %v412, %v417
    %vm420 = vcmp.gt.f32.partialorder %v418, 0.0
    %vm421 = vcmp.gt.f32.partialorder %v419, 0.0
    %v422 = vmul.f32 %v418, 0.2
    %v423 = vmul.f32 %v419, 0.2
    %v424 = vsel %vm420, %v418, %v422
    %v425 = vsel %vm421, %v419, %v423
    %v426 = vsel %vm153, %v424, -1e+30
    %v427 = vsel %vm154, %v425, -1e+30
    %vm428 = vcmask 130048
    %v429 = vsel %vm428, %v426, -inf
    %430 = vmax.xlane.f32.xlu0 %v429
    %v431 = vpop.xlane.xlu0 %430
    %v432 = vsel %vm428, %v427, -inf
    %433 = vmax.xlane.f32.xlu0 %v432
    %v434 = vpop.xlane.xlu0 %433
    %v435 = vsub.f32 %v426, %v431
    %v436 = vsub.f32 %v427, %v434
    %v437 = vmul.f32 %v435, 1.442695
    %v438 = vpow.pop %v437
    %v439 = vmul.f32 %v436, 1.442695
    %v440 = vpow.pop %v439
    %v441 = vsel %vm428, %v438, 0.0
    %442 = vadd.xlane.f32.xlu0 %v441
    %v443 = vpop.xlane.xlu0 %442
    %v444 = vsel %vm428, %v440, 0.0
    %445 = vadd.xlane.f32.xlu0 %v444
    %v446 = vpop.xlane.xlu0 %445
    %v447 = vrcp.pop %v443
    %v448 = vrcp.pop %v446
    %v449 = vmul.f32 %v438, %v447
    %v450 = vmul.f32 %v440, %v448
    %v451 = vlaneseq
    %v452 = vshrl.u32 %v451, 7
    %v453 = vsub.s32 0, %v452
    %v454 = vrot.slane %v244, %v453
    %v456 = vsel %vm428, %v449, 0
    %v459 = vsel %vm428, %v450, 0
    %461 = vmatprep.subr.mxu0 0.0
    %462 = vmatpush1.msra.mxu0 0.0
    %463 = vmatprep.subr.mxu0 0.0
    %464 = vmatpush1.msra.mxu0 0.0
    %465 = vmatprep.subr.mxu0 0.0
    %466 = vmatpush1.msra.mxu0 0.0
    %467 = vmatprep.subr.mxu0 0.0
    %468 = vmatpush1.msra.mxu0 0.0
    %469 = vmatprep.subr.mxu0 0.0
    %470 = vmatpush1.msra.mxu0 0.0
    %471 = vmatprep.subr.mxu0 0.0
    %472 = vmatpush1.msra.mxu0 0.0
    %473 = vmatprep.subr.mxu0 0.0
    %474 = vmatpush1.msra.mxu0 0.0
    %475 = vmatprep.subr.mxu0 0.0
    %476 = vmatpush1.msra.mxu0 0.0
    %477 = vmatprep.subr.mxu0 0.0
    %478 = vmatpush1.msra.mxu0 0.0
    %479 = vmatprep.subr.mxu0 0.0
    %480 = vmatpush1.msra.mxu0 0.0
    %481 = vmatprep.subr.mxu0 0.0
    %482 = vmatpush1.msra.mxu0 0.0
    %483 = vmatprep.subr.mxu0 0.0
    %484 = vmatpush1.msra.mxu0 0.0
    %485 = vmatprep.subr.mxu0 0.0
    %486 = vmatpush1.msra.mxu0 0.0
    %487 = vmatprep.subr.mxu0 0.0
    %488 = vmatpush1.msra.mxu0 0.0
    %489 = vmatprep.subr.mxu0 0.0
    %490 = vmatpush1.msra.mxu0 %v324
    %491 = vmatprep.subr.mxu0 0.0
    %492 = vmatpush1.msra.mxu0 %v319
    %493 = vmatprep.subr.mxu0 0.0
    %494 = vmatpush2.msra.mxu0 0.0
    %495 = vmatprep.subr.mxu0 0.0
    %496 = vmatpush2.msra.mxu0 0.0
    %497 = vmatprep.subr.mxu0 0.0
    %498 = vmatpush2.msra.mxu0 0.0
    %499 = vmatprep.subr.mxu0 0.0
    %500 = vmatpush2.msra.mxu0 0.0
    %501 = vmatprep.subr.mxu0 0.0
    %502 = vmatpush2.msra.mxu0 0.0
    %503 = vmatprep.subr.mxu0 0.0
    %504 = vmatpush2.msra.mxu0 0.0
    %505 = vmatprep.subr.mxu0 0.0
    %506 = vmatpush2.msra.mxu0 0.0
    %507 = vmatprep.subr.mxu0 0.0
    %508 = vmatpush2.msra.mxu0 0.0
    %509 = vmatprep.subr.mxu0 0.0
    %510 = vmatpush2.msra.mxu0 0.0
    %511 = vmatprep.subr.mxu0 0.0
    %512 = vmatpush2.msra.mxu0 0.0
    %513 = vmatprep.subr.mxu0 0.0
    %514 = vmatpush2.msra.mxu0 0.0
    %515 = vmatprep.subr.mxu0 0.0
    %516 = vmatpush2.msra.mxu0 0.0
    %517 = vmatprep.subr.mxu0 0.0
    %518 = vmatpush2.msra.mxu0 0.0
    %519 = vmatprep.subr.mxu0 0.0
    %520 = vmatpush2.msra.mxu0 0.0
    %521 = vmatprep.subr.mxu0 0.0
    %522 = vmatpush2.msra.mxu0 0.0
    %523 = vmatprep.subr.mxu0 0.0
    %524 = vmatpush2.msra.mxu0 0.0
    %525 = vmatprep.mubr.f32.mxu0 0.0
    %526 = vmatmul.mubr.f32.gmra.mxu0 %v456
    %v527 = vpop.f32.mrf.mxu0
    %v528 = vadd.f32 %v454, %v527
    %v529 = vpop.f32.mrf.mxu0
    %530 = vmatprep.mubr.f32.mxu0 0.0
    %531 = vmatmul.mubr.f32.gmra.mxu0 %v459
    %v532 = vpop.f32.mrf.mxu0
    %v533 = vadd.f32 %v454, %v532
    %v534 = vpop.f32.mrf.mxu0
    %535 = vdwg.mxu0
    %v536 = vmax.f32 %v528, 0.0
    %v537 = vmax.f32 %v533, 0.0
    %542 = vrot.lane.b32.xlu0 %v239, 88
    %v543 = vpop.permute.xlu0 %542
    %544 = vrot.lane.b32.xlu0 %v240, 88
    %v545 = vpop.permute.xlu0 %544
    %546 = vrot.lane.b32.xlu0 %v241, 88
    %v547 = vpop.permute.xlu0 %546
    %548 = vrot.lane.b32.xlu0 %v242, 88
    %v549 = vpop.permute.xlu0 %548
    %v555 = vsel %vm245, %v536, 0
    %v558 = vsel %vm245, %v537, 0
    %560 = vmatprep.subr.mxu0 0.0
    %561 = vmatpush1.msra.mxu0 0.0
    %562 = vmatprep.subr.mxu0 0.0
    %563 = vmatpush1.msra.mxu0 0.0
    %564 = vmatprep.subr.mxu0 0.0
    %565 = vmatpush1.msra.mxu0 0.0
    %566 = vmatprep.subr.mxu0 0.0
    %567 = vmatpush1.msra.mxu0 0.0
    %568 = vmatprep.subr.mxu0 0.0
    %569 = vmatpush1.msra.mxu0 0.0
    %570 = vmatprep.subr.mxu0 0.0
    %571 = vmatpush1.msra.mxu0 0.0
    %572 = vmatprep.subr.mxu0 0.0
    %573 = vmatpush1.msra.mxu0 0.0
    %574 = vmatprep.subr.mxu0 0.0
    %575 = vmatpush1.msra.mxu0 0.0
    %576 = vmatprep.subr.mxu0 0.0
    %577 = vmatpush1.msra.mxu0 0.0
    %578 = vmatprep.subr.mxu0 0.0
    %579 = vmatpush1.msra.mxu0 0.0
    %580 = vmatprep.subr.mxu0 0.0
    %581 = vmatpush1.msra.mxu0 0.0
    %582 = vmatprep.subr.mxu0 0.0
    %583 = vmatpush1.msra.mxu0 0.0
    %584 = vmatprep.subr.mxu0 0.0
    %585 = vmatpush1.msra.mxu0 %v549
    %586 = vmatprep.subr.mxu0 0.0
    %587 = vmatpush1.msra.mxu0 %v547
    %588 = vmatprep.subr.mxu0 0.0
    %589 = vmatpush1.msra.mxu0 %v545
    %590 = vmatprep.subr.mxu0 0.0
    %591 = vmatpush1.msra.mxu0 %v543
    %592 = vmatprep.subr.mxu0 0.0
    %593 = vmatpush2.msra.mxu0 0.0
    %594 = vmatprep.subr.mxu0 0.0
    %595 = vmatpush2.msra.mxu0 0.0
    %596 = vmatprep.subr.mxu0 0.0
    %597 = vmatpush2.msra.mxu0 0.0
    %598 = vmatprep.subr.mxu0 0.0
    %599 = vmatpush2.msra.mxu0 0.0
    %600 = vmatprep.subr.mxu0 0.0
    %601 = vmatpush2.msra.mxu0 0.0
    %602 = vmatprep.subr.mxu0 0.0
    %603 = vmatpush2.msra.mxu0 0.0
    %604 = vmatprep.subr.mxu0 0.0
    %605 = vmatpush2.msra.mxu0 0.0
    %606 = vmatprep.subr.mxu0 0.0
    %607 = vmatpush2.msra.mxu0 0.0
    %608 = vmatprep.subr.mxu0 0.0
    %609 = vmatpush2.msra.mxu0 0.0
    %610 = vmatprep.subr.mxu0 0.0
    %611 = vmatpush2.msra.mxu0 0.0
    %612 = vmatprep.subr.mxu0 0.0
    %613 = vmatpush2.msra.mxu0 0.0
    %614 = vmatprep.subr.mxu0 0.0
    %615 = vmatpush2.msra.mxu0 0.0
    %616 = vmatprep.subr.mxu0 0.0
    %617 = vmatpush2.msra.mxu0 0.0
    %618 = vmatprep.subr.mxu0 0.0
    %619 = vmatpush2.msra.mxu0 0.0
    %620 = vmatprep.subr.mxu0 0.0
    %621 = vmatpush2.msra.mxu0 0.0
    %622 = vmatprep.subr.mxu0 0.0
    %623 = vmatpush2.msra.mxu0 0.0
    %624 = vmatprep.mubr.f32.mxu0 0.0
    %625 = vmatmul.mubr.f32.gmra.mxu0 %v555
    %v626 = vpop.f32.mrf.mxu0
    %v627 = vadd.f32 0.0, %v626
    %v628 = vpop.f32.mrf.mxu0
    %629 = vmatprep.mubr.f32.mxu0 0.0
    %630 = vmatmul.mubr.f32.gmra.mxu0 %v558
    %v631 = vpop.f32.mrf.mxu0
    %v632 = vadd.f32 0.0, %v631
    %v633 = vpop.f32.mrf.mxu0
    %634 = vdwg.mxu0
    %635 = vrot.lane.b32.xlu0 %v243, 88
    %v636 = vpop.permute.xlu0 %635
    %v637 = vsel %vm245, %v636, 0
    %v640 = vsel %vm245, %v627, 0
    %v643 = vsel %vm245, %v632, 0
    %645 = vmatprep.subr.mxu0 0.0
    %646 = vmatpush1.xpose.msra.mxu0 0.0
    %647 = vmatprep.subr.mxu0 0.0
    %648 = vmatpush1.xpose.msra.mxu0 0.0
    %649 = vmatprep.subr.mxu0 0.0
    %650 = vmatpush1.xpose.msra.mxu0 0.0
    %651 = vmatprep.subr.mxu0 0.0
    %652 = vmatpush1.xpose.msra.mxu0 0.0
    %653 = vmatprep.subr.mxu0 0.0
    %654 = vmatpush1.xpose.msra.mxu0 0.0
    %655 = vmatprep.subr.mxu0 0.0
    %656 = vmatpush1.xpose.msra.mxu0 0.0
    %657 = vmatprep.subr.mxu0 0.0
    %658 = vmatpush1.xpose.msra.mxu0 0.0
    %659 = vmatprep.subr.mxu0 0.0
    %660 = vmatpush1.xpose.msra.mxu0 0.0
    %661 = vmatprep.subr.mxu0 0.0
    %662 = vmatpush1.xpose.msra.mxu0 0.0
    %663 = vmatprep.subr.mxu0 0.0
    %664 = vmatpush1.xpose.msra.mxu0 0.0
    %665 = vmatprep.subr.mxu0 0.0
    %666 = vmatpush1.xpose.msra.mxu0 0.0
    %667 = vmatprep.subr.mxu0 0.0
    %668 = vmatpush1.xpose.msra.mxu0 0.0
    %669 = vmatprep.subr.mxu0 0.0
    %670 = vmatpush1.xpose.msra.mxu0 0.0
    %671 = vmatprep.subr.mxu0 0.0
    %672 = vmatpush1.xpose.msra.mxu0 0.0
    %673 = vmatprep.subr.mxu0 0.0
    %674 = vmatpush1.xpose.msra.mxu0 %v643
    %675 = vmatprep.subr.mxu0 0.0
    %676 = vmatpush1.xpose.msra.mxu0 %v640
    %677 = vmatprep.subr.mxu0 0.0
    %678 = vmatpush2.xpose.msra.mxu0 0.0
    %679 = vmatprep.subr.mxu0 0.0
    %680 = vmatpush2.xpose.msra.mxu0 0.0
    %681 = vmatprep.subr.mxu0 0.0
    %682 = vmatpush2.xpose.msra.mxu0 0.0
    %683 = vmatprep.subr.mxu0 0.0
    %684 = vmatpush2.xpose.msra.mxu0 0.0
    %685 = vmatprep.subr.mxu0 0.0
    %686 = vmatpush2.xpose.msra.mxu0 0.0
    %687 = vmatprep.subr.mxu0 0.0
    %688 = vmatpush2.xpose.msra.mxu0 0.0
    %689 = vmatprep.subr.mxu0 0.0
    %690 = vmatpush2.xpose.msra.mxu0 0.0
    %691 = vmatprep.subr.mxu0 0.0
    %692 = vmatpush2.xpose.msra.mxu0 0.0
    %693 = vmatprep.subr.mxu0 0.0
    %694 = vmatpush2.xpose.msra.mxu0 0.0
    %695 = vmatprep.subr.mxu0 0.0
    %696 = vmatpush2.xpose.msra.mxu0 0.0
    %697 = vmatprep.subr.mxu0 0.0
    %698 = vmatpush2.xpose.msra.mxu0 0.0
    %699 = vmatprep.subr.mxu0 0.0
    %700 = vmatpush2.xpose.msra.mxu0 0.0
    %701 = vmatprep.subr.mxu0 0.0
    %702 = vmatpush2.xpose.msra.mxu0 0.0
    %703 = vmatprep.subr.mxu0 0.0
    %704 = vmatpush2.xpose.msra.mxu0 0.0
    %705 = vmatprep.subr.mxu0 0.0
    %706 = vmatpush2.xpose.msra.mxu0 0.0
    %707 = vmatprep.subr.mxu0 0.0
    %708 = vmatpush2.xpose.msra.mxu0 0.0
    %709 = vmatprep.mubr.f32.mxu0 0.0
    %710 = vmatmul.mubr.f32.gmra.mxu0 %v637
    %v711 = vpop.f32.mrf.mxu0
    %v712 = vadd.f32 0.0, %v711
    %v713 = vpop.f32.mrf.mxu0
    %714 = vdwg.mxu0
    %715 = vset.pattern.permute.xlu0 32
    %716 = vperm.xlu0 %715, %v627
    %v717 = vpop.permute.xlu0 %716
    %719 = vset.pattern.permute.xlu0 32
    %720 = vperm.xlu0 %719, %v632
    %v721 = vpop.permute.xlu0 %720
    %v723 = vlaneseq
    %v724 = vshrl.u32 %v723, 7
    %v725 = vsub.s32 0, %v724
    %v726 = vrot.slane %v712, %v725
    %v727 = vadd.f32 %v717, %v726
    %v728 = vadd.f32 %v721, %v726
    %vm729 = vcmp.gt.f32.partialorder %v727, 0.0
    %vm730 = vcmp.gt.f32.partialorder %v728, 0.0
    %v731 = vmul.f32 %v727, 0.2
    %v732 = vmul.f32 %v728, 0.2
    %v733 = vsel %vm729, %v727, %v731
    %v734 = vsel %vm730, %v728, %v732
    %v735 = vsel %vm153, %v733, -1e+30
    %v736 = vsel %vm154, %v734, -1e+30
    %v737 = vsel %vm428, %v735, -inf
    %738 = vmax.xlane.f32.xlu0 %v737
    %v739 = vpop.xlane.xlu0 %738
    %v740 = vsel %vm428, %v736, -inf
    %741 = vmax.xlane.f32.xlu0 %v740
    %v742 = vpop.xlane.xlu0 %741
    %v743 = vsub.f32 %v735, %v739
    %v744 = vsub.f32 %v736, %v742
    %v745 = vmul.f32 %v743, 1.442695
    %v746 = vpow.pop %v745
    %v747 = vmul.f32 %v744, 1.442695
    %v748 = vpow.pop %v747
    %v749 = vsel %vm428, %v746, 0.0
    %750 = vadd.xlane.f32.xlu0 %v749
    %v751 = vpop.xlane.xlu0 %750
    %v752 = vsel %vm428, %v748, 0.0
    %753 = vadd.xlane.f32.xlu0 %v752
    %v754 = vpop.xlane.xlu0 %753
    %v755 = vrcp.pop %v751
    %v756 = vrcp.pop %v754
    %v757 = vmul.f32 %v746, %v755
    %v758 = vmul.f32 %v748, %v756
    %760 = vrot.lane.b32.xlu0 %v454, 88
    %v761 = vpop.permute.xlu0 %760
    %v764 = vsel %vm428, %v757, 0
    %v767 = vsel %vm428, %v758, 0
    %769 = vmatprep.subr.mxu0 0.0
    %770 = vmatpush1.msra.mxu0 0.0
    %771 = vmatprep.subr.mxu0 0.0
    %772 = vmatpush1.msra.mxu0 0.0
    %773 = vmatprep.subr.mxu0 0.0
    %774 = vmatpush1.msra.mxu0 0.0
    %775 = vmatprep.subr.mxu0 0.0
    %776 = vmatpush1.msra.mxu0 0.0
    %777 = vmatprep.subr.mxu0 0.0
    %778 = vmatpush1.msra.mxu0 0.0
    %779 = vmatprep.subr.mxu0 0.0
    %780 = vmatpush1.msra.mxu0 0.0
    %781 = vmatprep.subr.mxu0 0.0
    %782 = vmatpush1.msra.mxu0 0.0
    %783 = vmatprep.subr.mxu0 0.0
    %784 = vmatpush1.msra.mxu0 0.0
    %785 = vmatprep.subr.mxu0 0.0
    %786 = vmatpush1.msra.mxu0 0.0
    %787 = vmatprep.subr.mxu0 0.0
    %788 = vmatpush1.msra.mxu0 0.0
    %789 = vmatprep.subr.mxu0 0.0
    %790 = vmatpush1.msra.mxu0 0.0
    %791 = vmatprep.subr.mxu0 0.0
    %792 = vmatpush1.msra.mxu0 0.0
    %793 = vmatprep.subr.mxu0 0.0
    %794 = vmatpush1.msra.mxu0 0.0
    %795 = vmatprep.subr.mxu0 0.0
    %796 = vmatpush1.msra.mxu0 0.0
    %797 = vmatprep.subr.mxu0 0.0
    %798 = vmatpush1.msra.mxu0 %v632
    %799 = vmatprep.subr.mxu0 0.0
    %800 = vmatpush1.msra.mxu0 %v627
    %801 = vmatprep.subr.mxu0 0.0
    %802 = vmatpush2.msra.mxu0 0.0
    %803 = vmatprep.subr.mxu0 0.0
    %804 = vmatpush2.msra.mxu0 0.0
    %805 = vmatprep.subr.mxu0 0.0
    %806 = vmatpush2.msra.mxu0 0.0
    %807 = vmatprep.subr.mxu0 0.0
    %808 = vmatpush2.msra.mxu0 0.0
    %809 = vmatprep.subr.mxu0 0.0
    %810 = vmatpush2.msra.mxu0 0.0
    %811 = vmatprep.subr.mxu0 0.0
    %812 = vmatpush2.msra.mxu0 0.0
    %813 = vmatprep.subr.mxu0 0.0
    %814 = vmatpush2.msra.mxu0 0.0
    %815 = vmatprep.subr.mxu0 0.0
    %816 = vmatpush2.msra.mxu0 0.0
    %817 = vmatprep.subr.mxu0 0.0
    %818 = vmatpush2.msra.mxu0 0.0
    %819 = vmatprep.subr.mxu0 0.0
    %820 = vmatpush2.msra.mxu0 0.0
    %821 = vmatprep.subr.mxu0 0.0
    %822 = vmatpush2.msra.mxu0 0.0
    %823 = vmatprep.subr.mxu0 0.0
    %824 = vmatpush2.msra.mxu0 0.0
    %825 = vmatprep.subr.mxu0 0.0
    %826 = vmatpush2.msra.mxu0 0.0
    %827 = vmatprep.subr.mxu0 0.0
    %828 = vmatpush2.msra.mxu0 0.0
    %829 = vmatprep.subr.mxu0 0.0
    %830 = vmatpush2.msra.mxu0 0.0
    %831 = vmatprep.subr.mxu0 0.0
    %832 = vmatpush2.msra.mxu0 0.0
    %833 = vmatprep.mubr.f32.mxu0 0.0
    %834 = vmatmul.mubr.f32.gmra.mxu0 %v764
    %v835 = vpop.f32.mrf.mxu0
    %v836 = vadd.f32 %v761, %v835
    %v837 = vpop.f32.mrf.mxu0
    %838 = vmatprep.mubr.f32.mxu0 0.0
    %839 = vmatmul.mubr.f32.gmra.mxu0 %v767
    %v840 = vpop.f32.mrf.mxu0
    %v841 = vadd.f32 %v761, %v840
    %v842 = vpop.f32.mrf.mxu0
    %843 = vdwg.mxu0
    %v844 = vmax.f32 %v836, 0.0
    %v845 = vmax.f32 %v841, 0.0
    %846 = vrot.lane.b32.xlu0 %v239, 48
    %v847 = vpop.permute.xlu0 %846
    %848 = vrot.lane.b32.xlu0 %v240, 48
    %v849 = vpop.permute.xlu0 %848
    %850 = vrot.lane.b32.xlu0 %v241, 48
    %v851 = vpop.permute.xlu0 %850
    %852 = vrot.lane.b32.xlu0 %v242, 48
    %v853 = vpop.permute.xlu0 %852
    %v859 = vsel %vm245, %v844, 0
    %v862 = vsel %vm245, %v845, 0
    %864 = vmatprep.subr.mxu0 0.0
    %865 = vmatpush1.msra.mxu0 0.0
    %866 = vmatprep.subr.mxu0 0.0
    %867 = vmatpush1.msra.mxu0 0.0
    %868 = vmatprep.subr.mxu0 0.0
    %869 = vmatpush1.msra.mxu0 0.0
    %870 = vmatprep.subr.mxu0 0.0
    %871 = vmatpush1.msra.mxu0 0.0
    %872 = vmatprep.subr.mxu0 0.0
    %873 = vmatpush1.msra.mxu0 0.0
    %874 = vmatprep.subr.mxu0 0.0
    %875 = vmatpush1.msra.mxu0 0.0
    %876 = vmatprep.subr.mxu0 0.0
    %877 = vmatpush1.msra.mxu0 0.0
    %878 = vmatprep.subr.mxu0 0.0
    %879 = vmatpush1.msra.mxu0 0.0
    %880 = vmatprep.subr.mxu0 0.0
    %881 = vmatpush1.msra.mxu0 0.0
    %882 = vmatprep.subr.mxu0 0.0
    %883 = vmatpush1.msra.mxu0 0.0
    %884 = vmatprep.subr.mxu0 0.0
    %885 = vmatpush1.msra.mxu0 0.0
    %886 = vmatprep.subr.mxu0 0.0
    %887 = vmatpush1.msra.mxu0 0.0
    %888 = vmatprep.subr.mxu0 0.0
    %889 = vmatpush1.msra.mxu0 %v853
    %890 = vmatprep.subr.mxu0 0.0
    %891 = vmatpush1.msra.mxu0 %v851
    %892 = vmatprep.subr.mxu0 0.0
    %893 = vmatpush1.msra.mxu0 %v849
    %894 = vmatprep.subr.mxu0 0.0
    %895 = vmatpush1.msra.mxu0 %v847
    %896 = vmatprep.subr.mxu0 0.0
    %897 = vmatpush2.msra.mxu0 0.0
    %898 = vmatprep.subr.mxu0 0.0
    %899 = vmatpush2.msra.mxu0 0.0
    %900 = vmatprep.subr.mxu0 0.0
    %901 = vmatpush2.msra.mxu0 0.0
    %902 = vmatprep.subr.mxu0 0.0
    %903 = vmatpush2.msra.mxu0 0.0
    %904 = vmatprep.subr.mxu0 0.0
    %905 = vmatpush2.msra.mxu0 0.0
    %906 = vmatprep.subr.mxu0 0.0
    %907 = vmatpush2.msra.mxu0 0.0
    %908 = vmatprep.subr.mxu0 0.0
    %909 = vmatpush2.msra.mxu0 0.0
    %910 = vmatprep.subr.mxu0 0.0
    %911 = vmatpush2.msra.mxu0 0.0
    %912 = vmatprep.subr.mxu0 0.0
    %913 = vmatpush2.msra.mxu0 0.0
    %914 = vmatprep.subr.mxu0 0.0
    %915 = vmatpush2.msra.mxu0 0.0
    %916 = vmatprep.subr.mxu0 0.0
    %917 = vmatpush2.msra.mxu0 0.0
    %918 = vmatprep.subr.mxu0 0.0
    %919 = vmatpush2.msra.mxu0 0.0
    %920 = vmatprep.subr.mxu0 0.0
    %921 = vmatpush2.msra.mxu0 0.0
    %922 = vmatprep.subr.mxu0 0.0
    %923 = vmatpush2.msra.mxu0 0.0
    %924 = vmatprep.subr.mxu0 0.0
    %925 = vmatpush2.msra.mxu0 0.0
    %926 = vmatprep.subr.mxu0 0.0
    %927 = vmatpush2.msra.mxu0 0.0
    %928 = vmatprep.mubr.f32.mxu0 0.0
    %929 = vmatmul.mubr.f32.gmra.mxu0 %v859
    %v930 = vpop.f32.mrf.mxu0
    %v931 = vadd.f32 0.0, %v930
    %v932 = vpop.f32.mrf.mxu0
    %933 = vmatprep.mubr.f32.mxu0 0.0
    %934 = vmatmul.mubr.f32.gmra.mxu0 %v862
    %v935 = vpop.f32.mrf.mxu0
    %v936 = vadd.f32 0.0, %v935
    %v937 = vpop.f32.mrf.mxu0
    %938 = vdwg.mxu0
    %939 = vrot.lane.b32.xlu0 %v243, 48
    %v940 = vpop.permute.xlu0 %939
    %v941 = vsel %vm245, %v940, 0
    %v944 = vsel %vm245, %v931, 0
    %v947 = vsel %vm245, %v936, 0
    %949 = vmatprep.subr.mxu0 0.0
    %950 = vmatpush1.xpose.msra.mxu0 0.0
    %951 = vmatprep.subr.mxu0 0.0
    %952 = vmatpush1.xpose.msra.mxu0 0.0
    %953 = vmatprep.subr.mxu0 0.0
    %954 = vmatpush1.xpose.msra.mxu0 0.0
    %955 = vmatprep.subr.mxu0 0.0
    %956 = vmatpush1.xpose.msra.mxu0 0.0
    %957 = vmatprep.subr.mxu0 0.0
    %958 = vmatpush1.xpose.msra.mxu0 0.0
    %959 = vmatprep.subr.mxu0 0.0
    %960 = vmatpush1.xpose.msra.mxu0 0.0
    %961 = vmatprep.subr.mxu0 0.0
    %962 = vmatpush1.xpose.msra.mxu0 0.0
    %963 = vmatprep.subr.mxu0 0.0
    %964 = vmatpush1.xpose.msra.mxu0 0.0
    %965 = vmatprep.subr.mxu0 0.0
    %966 = vmatpush1.xpose.msra.mxu0 0.0
    %967 = vmatprep.subr.mxu0 0.0
    %968 = vmatpush1.xpose.msra.mxu0 0.0
    %969 = vmatprep.subr.mxu0 0.0
    %970 = vmatpush1.xpose.msra.mxu0 0.0
    %971 = vmatprep.subr.mxu0 0.0
    %972 = vmatpush1.xpose.msra.mxu0 0.0
    %973 = vmatprep.subr.mxu0 0.0
    %974 = vmatpush1.xpose.msra.mxu0 0.0
    %975 = vmatprep.subr.mxu0 0.0
    %976 = vmatpush1.xpose.msra.mxu0 0.0
    %977 = vmatprep.subr.mxu0 0.0
    %978 = vmatpush1.xpose.msra.mxu0 %v947
    %979 = vmatprep.subr.mxu0 0.0
    %980 = vmatpush1.xpose.msra.mxu0 %v944
    %981 = vmatprep.subr.mxu0 0.0
    %982 = vmatpush2.xpose.msra.mxu0 0.0
    %983 = vmatprep.subr.mxu0 0.0
    %984 = vmatpush2.xpose.msra.mxu0 0.0
    %985 = vmatprep.subr.mxu0 0.0
    %986 = vmatpush2.xpose.msra.mxu0 0.0
    %987 = vmatprep.subr.mxu0 0.0
    %988 = vmatpush2.xpose.msra.mxu0 0.0
    %989 = vmatprep.subr.mxu0 0.0
    %990 = vmatpush2.xpose.msra.mxu0 0.0
    %991 = vmatprep.subr.mxu0 0.0
    %992 = vmatpush2.xpose.msra.mxu0 0.0
    %993 = vmatprep.subr.mxu0 0.0
    %994 = vmatpush2.xpose.msra.mxu0 0.0
    %995 = vmatprep.subr.mxu0 0.0
    %996 = vmatpush2.xpose.msra.mxu0 0.0
    %997 = vmatprep.subr.mxu0 0.0
    %998 = vmatpush2.xpose.msra.mxu0 0.0
    %999 = vmatprep.subr.mxu0 0.0
    %1000 = vmatpush2.xpose.msra.mxu0 0.0
    %1001 = vmatprep.subr.mxu0 0.0
    %1002 = vmatpush2.xpose.msra.mxu0 0.0
    %1003 = vmatprep.subr.mxu0 0.0
    %1004 = vmatpush2.xpose.msra.mxu0 0.0
    %1005 = vmatprep.subr.mxu0 0.0
    %1006 = vmatpush2.xpose.msra.mxu0 0.0
    %1007 = vmatprep.subr.mxu0 0.0
    %1008 = vmatpush2.xpose.msra.mxu0 0.0
    %1009 = vmatprep.subr.mxu0 0.0
    %1010 = vmatpush2.xpose.msra.mxu0 0.0
    %1011 = vmatprep.subr.mxu0 0.0
    %1012 = vmatpush2.xpose.msra.mxu0 0.0
    %1013 = vmatprep.mubr.f32.mxu0 0.0
    %1014 = vmatmul.mubr.f32.gmra.mxu0 %v941
    %v1015 = vpop.f32.mrf.mxu0
    %v1016 = vadd.f32 0.0, %v1015
    %v1017 = vpop.f32.mrf.mxu0
    %1018 = vdwg.mxu0
    %1019 = vset.pattern.permute.xlu0 32
    %1020 = vperm.xlu0 %1019, %v931
    %v1021 = vpop.permute.xlu0 %1020
    %1023 = vset.pattern.permute.xlu0 32
    %1024 = vperm.xlu0 %1023, %v936
    %v1025 = vpop.permute.xlu0 %1024
    %v1027 = vlaneseq
    %v1028 = vshrl.u32 %v1027, 7
    %v1029 = vsub.s32 0, %v1028
    %v1030 = vrot.slane %v1016, %v1029
    %v1031 = vadd.f32 %v1021, %v1030
    %v1032 = vadd.f32 %v1025, %v1030
    %vm1033 = vcmp.gt.f32.partialorder %v1031, 0.0
    %vm1034 = vcmp.gt.f32.partialorder %v1032, 0.0
    %v1035 = vmul.f32 %v1031, 0.2
    %v1036 = vmul.f32 %v1032, 0.2
    %v1037 = vsel %vm1033, %v1031, %v1035
    %v1038 = vsel %vm1034, %v1032, %v1036
    %v1039 = vsel %vm153, %v1037, -1e+30
    %v1040 = vsel %vm154, %v1038, -1e+30
    %v1041 = vsel %vm428, %v1039, -inf
    %1042 = vmax.xlane.f32.xlu0 %v1041
    %v1043 = vpop.xlane.xlu0 %1042
    %v1044 = vsel %vm428, %v1040, -inf
    %1045 = vmax.xlane.f32.xlu0 %v1044
    %v1046 = vpop.xlane.xlu0 %1045
    %v1047 = vsub.f32 %v1039, %v1043
    %v1048 = vsub.f32 %v1040, %v1046
    %v1049 = vmul.f32 %v1047, 1.442695
    %v1050 = vpow.pop %v1049
    %v1051 = vmul.f32 %v1048, 1.442695
    %v1052 = vpow.pop %v1051
    %v1053 = vsel %vm428, %v1050, 0.0
    %1054 = vadd.xlane.f32.xlu0 %v1053
    %v1055 = vpop.xlane.xlu0 %1054
    %v1056 = vsel %vm428, %v1052, 0.0
    %1057 = vadd.xlane.f32.xlu0 %v1056
    %v1058 = vpop.xlane.xlu0 %1057
    %v1059 = vrcp.pop %v1055
    %v1060 = vrcp.pop %v1058
    %v1061 = vmul.f32 %v1050, %v1059
    %v1062 = vmul.f32 %v1052, %v1060
    %1063 = vrot.lane.b32.xlu0 %v454, 48
    %v1064 = vpop.permute.xlu0 %1063
    %v1067 = vsel %vm428, %v1061, 0
    %v1070 = vsel %vm428, %v1062, 0
    %1072 = vmatprep.subr.mxu0 0.0
    %1073 = vmatpush1.msra.mxu0 0.0
    %1074 = vmatprep.subr.mxu0 0.0
    %1075 = vmatpush1.msra.mxu0 0.0
    %1076 = vmatprep.subr.mxu0 0.0
    %1077 = vmatpush1.msra.mxu0 0.0
    %1078 = vmatprep.subr.mxu0 0.0
    %1079 = vmatpush1.msra.mxu0 0.0
    %1080 = vmatprep.subr.mxu0 0.0
    %1081 = vmatpush1.msra.mxu0 0.0
    %1082 = vmatprep.subr.mxu0 0.0
    %1083 = vmatpush1.msra.mxu0 0.0
    %1084 = vmatprep.subr.mxu0 0.0
    %1085 = vmatpush1.msra.mxu0 0.0
    %1086 = vmatprep.subr.mxu0 0.0
    %1087 = vmatpush1.msra.mxu0 0.0
    %1088 = vmatprep.subr.mxu0 0.0
    %1089 = vmatpush1.msra.mxu0 0.0
    %1090 = vmatprep.subr.mxu0 0.0
    %1091 = vmatpush1.msra.mxu0 0.0
    %1092 = vmatprep.subr.mxu0 0.0
    %1093 = vmatpush1.msra.mxu0 0.0
    %1094 = vmatprep.subr.mxu0 0.0
    %1095 = vmatpush1.msra.mxu0 0.0
    %1096 = vmatprep.subr.mxu0 0.0
    %1097 = vmatpush1.msra.mxu0 0.0
    %1098 = vmatprep.subr.mxu0 0.0
    %1099 = vmatpush1.msra.mxu0 0.0
    %1100 = vmatprep.subr.mxu0 0.0
    %1101 = vmatpush1.msra.mxu0 %v936
    %1102 = vmatprep.subr.mxu0 0.0
    %1103 = vmatpush1.msra.mxu0 %v931
    %1104 = vmatprep.subr.mxu0 0.0
    %1105 = vmatpush2.msra.mxu0 0.0
    %1106 = vmatprep.subr.mxu0 0.0
    %1107 = vmatpush2.msra.mxu0 0.0
    %1108 = vmatprep.subr.mxu0 0.0
    %1109 = vmatpush2.msra.mxu0 0.0
    %1110 = vmatprep.subr.mxu0 0.0
    %1111 = vmatpush2.msra.mxu0 0.0
    %1112 = vmatprep.subr.mxu0 0.0
    %1113 = vmatpush2.msra.mxu0 0.0
    %1114 = vmatprep.subr.mxu0 0.0
    %1115 = vmatpush2.msra.mxu0 0.0
    %1116 = vmatprep.subr.mxu0 0.0
    %1117 = vmatpush2.msra.mxu0 0.0
    %1118 = vmatprep.subr.mxu0 0.0
    %1119 = vmatpush2.msra.mxu0 0.0
    %1120 = vmatprep.subr.mxu0 0.0
    %1121 = vmatpush2.msra.mxu0 0.0
    %1122 = vmatprep.subr.mxu0 0.0
    %1123 = vmatpush2.msra.mxu0 0.0
    %1124 = vmatprep.subr.mxu0 0.0
    %1125 = vmatpush2.msra.mxu0 0.0
    %1126 = vmatprep.subr.mxu0 0.0
    %1127 = vmatpush2.msra.mxu0 0.0
    %1128 = vmatprep.subr.mxu0 0.0
    %1129 = vmatpush2.msra.mxu0 0.0
    %1130 = vmatprep.subr.mxu0 0.0
    %1131 = vmatpush2.msra.mxu0 0.0
    %1132 = vmatprep.subr.mxu0 0.0
    %1133 = vmatpush2.msra.mxu0 0.0
    %1134 = vmatprep.subr.mxu0 0.0
    %1135 = vmatpush2.msra.mxu0 0.0
    %1136 = vmatprep.mubr.f32.mxu0 0.0
    %1137 = vmatmul.mubr.f32.gmra.mxu0 %v1067
    %v1138 = vpop.f32.mrf.mxu0
    %v1139 = vadd.f32 %v1064, %v1138
    %v1140 = vpop.f32.mrf.mxu0
    %1141 = vmatprep.mubr.f32.mxu0 0.0
    %1142 = vmatmul.mubr.f32.gmra.mxu0 %v1070
    %v1143 = vpop.f32.mrf.mxu0
    %v1144 = vadd.f32 %v1064, %v1143
    %v1145 = vpop.f32.mrf.mxu0
    %1146 = vdwg.mxu0
    %v1147 = vmax.f32 %v1139, 0.0
    %v1148 = vmax.f32 %v1144, 0.0
    %v1149 = vld [vmem:[#allocation2 + $0x23] sm:$0x3]
    %1151 = vrot.lane.b32.xlu0 %v1149, 88
    %v1152 = vpop.permute.xlu0 %1151
    %v1153 = vsel %vm428, %v1152, 0
    %1155 = vmatprep.subr.mxu0 0.0
    %1156 = vmatpush1.msra.mxu0 0.0
    %1157 = vmatprep.subr.mxu0 0.0
    %1158 = vmatpush1.msra.mxu0 0.0
    %1159 = vmatprep.subr.mxu0 0.0
    %1160 = vmatpush1.msra.mxu0 0.0
    %1161 = vmatprep.subr.mxu0 0.0
    %1162 = vmatpush1.msra.mxu0 0.0
    %1163 = vmatprep.subr.mxu0 0.0
    %1164 = vmatpush1.msra.mxu0 0.0
    %1165 = vmatprep.subr.mxu0 0.0
    %1166 = vmatpush1.msra.mxu0 0.0
    %1167 = vmatprep.subr.mxu0 0.0
    %1168 = vmatpush1.msra.mxu0 0.0
    %1169 = vmatprep.subr.mxu0 0.0
    %1170 = vmatpush1.msra.mxu0 0.0
    %1171 = vmatprep.subr.mxu0 0.0
    %1172 = vmatpush1.msra.mxu0 0.0
    %1173 = vmatprep.subr.mxu0 0.0
    %1174 = vmatpush1.msra.mxu0 0.0
    %1175 = vmatprep.subr.mxu0 0.0
    %1176 = vmatpush1.msra.mxu0 0.0
    %1177 = vmatprep.subr.mxu0 0.0
    %1178 = vmatpush1.msra.mxu0 0.0
    %1179 = vmatprep.subr.mxu0 0.0
    %1180 = vmatpush1.msra.mxu0 0.0
    %1181 = vmatprep.subr.mxu0 0.0
    %1182 = vmatpush1.msra.mxu0 0.0
    %1183 = vmatprep.subr.mxu0 0.0
    %1184 = vmatpush1.msra.mxu0 %v1148
    %1185 = vmatprep.subr.mxu0 0.0
    %1186 = vmatpush1.msra.mxu0 %v1147
    %1187 = vmatprep.subr.mxu0 0.0
    %1188 = vmatpush2.msra.mxu0 0.0
    %1189 = vmatprep.subr.mxu0 0.0
    %1190 = vmatpush2.msra.mxu0 0.0
    %1191 = vmatprep.subr.mxu0 0.0
    %1192 = vmatpush2.msra.mxu0 0.0
    %1193 = vmatprep.subr.mxu0 0.0
    %1194 = vmatpush2.msra.mxu0 0.0
    %1195 = vmatprep.subr.mxu0 0.0
    %1196 = vmatpush2.msra.mxu0 0.0
    %1197 = vmatprep.subr.mxu0 0.0
    %1198 = vmatpush2.msra.mxu0 0.0
    %1199 = vmatprep.subr.mxu0 0.0
    %1200 = vmatpush2.msra.mxu0 0.0
    %1201 = vmatprep.subr.mxu0 0.0
    %1202 = vmatpush2.msra.mxu0 0.0
    %1203 = vmatprep.subr.mxu0 0.0
    %1204 = vmatpush2.msra.mxu0 0.0
    %1205 = vmatprep.subr.mxu0 0.0
    %1206 = vmatpush2.msra.mxu0 0.0
    %1207 = vmatprep.subr.mxu0 0.0
    %1208 = vmatpush2.msra.mxu0 0.0
    %1209 = vmatprep.subr.mxu0 0.0
    %1210 = vmatpush2.msra.mxu0 0.0
    %1211 = vmatprep.subr.mxu0 0.0
    %1212 = vmatpush2.msra.mxu0 0.0
    %1213 = vmatprep.subr.mxu0 0.0
    %1214 = vmatpush2.msra.mxu0 0.0
    %1215 = vmatprep.subr.mxu0 0.0
    %1216 = vmatpush2.msra.mxu0 0.0
    %1217 = vmatprep.subr.mxu0 0.0
    %1218 = vmatpush2.msra.mxu0 0.0
    %1219 = vmatprep.mubr.f32.mxu0 0.0
    %1220 = vmatmul.mubr.f32.gmra.mxu0 %v1153
    %v1221 = vpop.f32.mrf.mxu0
    %v1222 = vadd.f32 0.0, %v1221
    %v1223 = vpop.f32.mrf.mxu0
    %1224 = vdwg.mxu0
    %1227 = vrot.lane.b32.xlu0 %v139, 120
    %v1228 = vpop.permute.xlu0 %1227
    %1229 = vrot.lane.b32.xlu0 %v140, 120
    %v1230 = vpop.permute.xlu0 %1229
    %1232 = vrot.lane.b32.xlu0 %v159, 88
    %v1233 = vpop.permute.xlu0 %1232
    %v1236 = vsel %vm245, %v1222, 0
    %v1238 = vsel %vm245, %v1228, 0
    %v1240 = vsel %vm245, %v1230, 0
    %1242 = vmatprep.subr.mxu0 0.0
    %1243 = vmatpush1.xpose.msra.mxu0 0.0
    %1244 = vmatprep.subr.mxu0 0.0
    %1245 = vmatpush1.xpose.msra.mxu0 0.0
    %1246 = vmatprep.subr.mxu0 0.0
    %1247 = vmatpush1.xpose.msra.mxu0 0.0
    %1248 = vmatprep.subr.mxu0 0.0
    %1249 = vmatpush1.xpose.msra.mxu0 0.0
    %1250 = vmatprep.subr.mxu0 0.0
    %1251 = vmatpush1.xpose.msra.mxu0 0.0
    %1252 = vmatprep.subr.mxu0 0.0
    %1253 = vmatpush1.xpose.msra.mxu0 0.0
    %1254 = vmatprep.subr.mxu0 0.0
    %1255 = vmatpush1.xpose.msra.mxu0 0.0
    %1256 = vmatprep.subr.mxu0 0.0
    %1257 = vmatpush1.xpose.msra.mxu0 0.0
    %1258 = vmatprep.subr.mxu0 0.0
    %1259 = vmatpush1.xpose.msra.mxu0 0.0
    %1260 = vmatprep.subr.mxu0 0.0
    %1261 = vmatpush1.xpose.msra.mxu0 0.0
    %1262 = vmatprep.subr.mxu0 0.0
    %1263 = vmatpush1.xpose.msra.mxu0 0.0
    %1264 = vmatprep.subr.mxu0 0.0
    %1265 = vmatpush1.xpose.msra.mxu0 0.0
    %1266 = vmatprep.subr.mxu0 0.0
    %1267 = vmatpush1.xpose.msra.mxu0 0.0
    %1268 = vmatprep.subr.mxu0 0.0
    %1269 = vmatpush1.xpose.msra.mxu0 0.0
    %1270 = vmatprep.subr.mxu0 0.0
    %1271 = vmatpush1.xpose.msra.mxu0 %v1240
    %1272 = vmatprep.subr.mxu0 0.0
    %1273 = vmatpush1.xpose.msra.mxu0 %v1238
    %1274 = vmatprep.subr.mxu0 0.0
    %1275 = vmatpush2.xpose.msra.mxu0 0.0
    %1276 = vmatprep.subr.mxu0 0.0
    %1277 = vmatpush2.xpose.msra.mxu0 0.0
    %1278 = vmatprep.subr.mxu0 0.0
    %1279 = vmatpush2.xpose.msra.mxu0 0.0
    %1280 = vmatprep.subr.mxu0 0.0
    %1281 = vmatpush2.xpose.msra.mxu0 0.0
    %1282 = vmatprep.subr.mxu0 0.0
    %1283 = vmatpush2.xpose.msra.mxu0 0.0
    %1284 = vmatprep.subr.mxu0 0.0
    %1285 = vmatpush2.xpose.msra.mxu0 0.0
    %1286 = vmatprep.subr.mxu0 0.0
    %1287 = vmatpush2.xpose.msra.mxu0 0.0
    %1288 = vmatprep.subr.mxu0 0.0
    %1289 = vmatpush2.xpose.msra.mxu0 0.0
    %1290 = vmatprep.subr.mxu0 0.0
    %1291 = vmatpush2.xpose.msra.mxu0 0.0
    %1292 = vmatprep.subr.mxu0 0.0
    %1293 = vmatpush2.xpose.msra.mxu0 0.0
    %1294 = vmatprep.subr.mxu0 0.0
    %1295 = vmatpush2.xpose.msra.mxu0 0.0
    %1296 = vmatprep.subr.mxu0 0.0
    %1297 = vmatpush2.xpose.msra.mxu0 0.0
    %1298 = vmatprep.subr.mxu0 0.0
    %1299 = vmatpush2.xpose.msra.mxu0 0.0
    %1300 = vmatprep.subr.mxu0 0.0
    %1301 = vmatpush2.xpose.msra.mxu0 0.0
    %1302 = vmatprep.subr.mxu0 0.0
    %1303 = vmatpush2.xpose.msra.mxu0 0.0
    %1304 = vmatprep.subr.mxu0 0.0
    %1305 = vmatpush2.xpose.msra.mxu0 0.0
    %1306 = vmatprep.mubr.f32.mxu0 0.0
    %1307 = vmatmul.mubr.f32.gmra.mxu0 %v1236
    %v1308 = vpop.f32.mrf.mxu0
    %v1309 = vadd.f32 %v1233, %v1308
    %v1310 = vpop.f32.mrf.mxu0
    %1311 = vdwg.mxu0
    %v1312 = vmax.f32 %v1309, 0.0
    %v1313 = vld [vmem:[#allocation2 + $0x38] sm:$0x1]
    %v1314 = vlaneseq
    %v1315 = vshrl.u32 %v1314, 7
    %v1316 = vsub.s32 0, %v1315
    %v1317 = vrot.slane %v1313, %v1316
    %v1319 = vsel %vm428, %v1312, 0
    %1321 = vmatprep.subr.mxu0 0.0
    %1322 = vmatpush1.msra.mxu0 0.0
    %1323 = vmatprep.subr.mxu0 0.0
    %1324 = vmatpush1.msra.mxu0 0.0
    %1325 = vmatprep.subr.mxu0 0.0
    %1326 = vmatpush1.msra.mxu0 0.0
    %1327 = vmatprep.subr.mxu0 0.0
    %1328 = vmatpush1.msra.mxu0 0.0
    %1329 = vmatprep.subr.mxu0 0.0
    %1330 = vmatpush1.msra.mxu0 0.0
    %1331 = vmatprep.subr.mxu0 0.0
    %1332 = vmatpush1.msra.mxu0 0.0
    %1333 = vmatprep.subr.mxu0 0.0
    %1334 = vmatpush1.msra.mxu0 0.0
    %1335 = vmatprep.subr.mxu0 0.0
    %1336 = vmatpush1.msra.mxu0 0.0
    %1337 = vmatprep.subr.mxu0 0.0
    %1338 = vmatpush1.msra.mxu0 0.0
    %1339 = vmatprep.subr.mxu0 0.0
    %1340 = vmatpush1.msra.mxu0 0.0
    %1341 = vmatprep.subr.mxu0 0.0
    %1342 = vmatpush1.msra.mxu0 0.0
    %1343 = vmatprep.subr.mxu0 0.0
    %1344 = vmatpush1.msra.mxu0 0.0
    %1345 = vmatprep.subr.mxu0 0.0
    %1346 = vmatpush1.msra.mxu0 0.0
    %1347 = vmatprep.subr.mxu0 0.0
    %1348 = vmatpush1.msra.mxu0 0.0
    %1349 = vmatprep.subr.mxu0 0.0
    %1350 = vmatpush1.msra.mxu0 %v140
    %1351 = vmatprep.subr.mxu0 0.0
    %1352 = vmatpush1.msra.mxu0 %v139
    %1353 = vmatprep.subr.mxu0 0.0
    %1354 = vmatpush2.msra.mxu0 0.0
    %1355 = vmatprep.subr.mxu0 0.0
    %1356 = vmatpush2.msra.mxu0 0.0
    %1357 = vmatprep.subr.mxu0 0.0
    %1358 = vmatpush2.msra.mxu0 0.0
    %1359 = vmatprep.subr.mxu0 0.0
    %1360 = vmatpush2.msra.mxu0 0.0
    %1361 = vmatprep.subr.mxu0 0.0
    %1362 = vmatpush2.msra.mxu0 0.0
    %1363 = vmatprep.subr.mxu0 0.0
    %1364 = vmatpush2.msra.mxu0 0.0
    %1365 = vmatprep.subr.mxu0 0.0
    %1366 = vmatpush2.msra.mxu0 0.0
    %1367 = vmatprep.subr.mxu0 0.0
    %1368 = vmatpush2.msra.mxu0 0.0
    %1369 = vmatprep.subr.mxu0 0.0
    %1370 = vmatpush2.msra.mxu0 0.0
    %1371 = vmatprep.subr.mxu0 0.0
    %1372 = vmatpush2.msra.mxu0 0.0
    %1373 = vmatprep.subr.mxu0 0.0
    %1374 = vmatpush2.msra.mxu0 0.0
    %1375 = vmatprep.subr.mxu0 0.0
    %1376 = vmatpush2.msra.mxu0 0.0
    %1377 = vmatprep.subr.mxu0 0.0
    %1378 = vmatpush2.msra.mxu0 0.0
    %1379 = vmatprep.subr.mxu0 0.0
    %1380 = vmatpush2.msra.mxu0 0.0
    %1381 = vmatprep.subr.mxu0 0.0
    %1382 = vmatpush2.msra.mxu0 0.0
    %1383 = vmatprep.subr.mxu0 0.0
    %1384 = vmatpush2.msra.mxu0 0.0
    %1385 = vmatprep.mubr.f32.mxu0 0.0
    %1386 = vmatmul.mubr.f32.gmra.mxu0 %v1319
    %v1387 = vpop.f32.mrf.mxu0
    %v1388 = vadd.f32 %v1317, %v1387
    %v1389 = vpop.f32.mrf.mxu0
    %1390 = vdwg.mxu0
    %1391 = vst [vmem:[#allocation5] sm:$0x3] %v1388
    // Predicated region
    $region14: #{gnn_forward.1} parent=1 // pred_check
      _
    $region15: #{gnn_forward.1} parent=1 // pred_check_branch
      %1393 = sbr.rel (0) target = $region17
    $region16: #{gnn_forward.1} parent=1 // pred_region
      %s1395 = ssub.s32 32, 32
      %1396 = vsyncadd [#allocation4], %s1395
      %s1398 = sshll.u32 [#allocation5], 4
      %s1399 = int_to_ptr.vmem [resolvable:$true] %s1398
      %1401 = dma.vmem_to_hbm [thread:$0]  %s1399, 32, %s2, [#allocation4]
    $region17: #{gnn_forward.1} parent=1 // pred_fallthru
      _
    // Predicated region
    $region18: #{gnn_forward.1} parent=1 // pred_check
      _
    $region19: #{gnn_forward.1} parent=1 // pred_check_branch
      %1403 = sbr.rel (0) target = $region21
    $region20: #{gnn_forward.1} parent=1 // pred_region
      %1404 = dma.done [#allocation4], 32
    $region21: #{gnn_forward.1} parent=1 // pred_fallthru
      _
    %1405 = vsyncpa [#allocation3], 1
    %1406 = vsyncpa [#allocation4], 1

</llo_original>
